<compile_context>
chip_gen: v7x
topology: tpu7x:2x2x1
jax: 0.10.0
libtpu: 0.0.40
codegen_flags: <defaults>
</compile_context>

<pallas_src>
import functools

import jax
import jax.numpy as jnp
import numpy as np
from jax.experimental import pallas as pl
from jax.experimental.pallas import tpu as pltpu


# ------------------------- in-kernel helpers ------------------------------
def _silu(v):
    # sigmoid written via tanh: exact, EUP-friendly, no 0*inf corner case.
    return v * (0.5 * jnp.tanh(0.5 * v) + 0.5)


def _softplus(v):
    vc = jnp.minimum(v, 20.0)
    return jnp.where(v > 20.0, v, jnp.log(1.0 + jnp.exp(vc)))


# ------------------------------ kernel ------------------------------------
def _mamba2_block_kernel(u_ref, wz_ref, wx_ref, wb_ref, wc_ref, wdt_ref,
                         cwx_ref, cwb_ref, cwc_ref, cbx_ref, cbb_ref, cbc_ref,
                         alog_ref, dtbias_ref, dskip_ref, rmsw_ref, wout_ref,
                         out_ref, yacc_ref, *, nheads, headdim, eps):
    bt, L, Dp = u_ref.shape
    M = bt * L
    d_state = wb_ref.shape[1]
    d_conv = cwx_ref.shape[0]

    u = u_ref[...].reshape(M, Dp)                       # (M, Dp) f32
    u_bf = u.astype(jnp.bfloat16)

    # position of each row inside its length-L sequence (segment masking)
    t_in_seq = jax.lax.broadcasted_iota(jnp.int32, (M, 1), 0) % L

    # ---- input projection: bf16 MXU inputs, f32 accumulation ----------------
    z = jnp.dot(u_bf, wz_ref[...], preferred_element_type=jnp.float32)       # (M, d_inner)
    x_lin = jnp.dot(u_bf, wx_ref[...], preferred_element_type=jnp.float32)   # (M, d_inner)
    b_lin = jnp.dot(u_bf, wb_ref[...], preferred_element_type=jnp.float32)   # (M, d_state)
    c_lin = jnp.dot(u_bf, wc_ref[...], preferred_element_type=jnp.float32)   # (M, d_state)
    dt_raw = jnp.dot(u, wdt_ref[...], preferred_element_type=jnp.float32)    # (M, nheads) f32

    # ---- causal depthwise conv over time: sublane rolls + segment mask ------
    def dwconv(v, w_ref, b_ref):
        w = w_ref[...]                                   # (d_conv, width) f32
        acc = v * w[d_conv - 1:d_conv, :]                # zero-shift tap
        for k in range(d_conv - 1):
            s = d_conv - 1 - k                           # look s steps into the past
            shifted = pltpu.roll(v, shift=s, axis=0)
            acc = acc + jnp.where(t_in_seq >= s, shifted, 0.0) * w[k:k + 1, :]
        return _silu(acc + b_ref[...])

    x_act = dwconv(x_lin, cwx_ref, cbx_ref)              # (M, d_inner)
    b_act = dwconv(b_lin, cwb_ref, cbb_ref)              # (M, d_state)
    c_act = dwconv(c_lin, cwc_ref, cbc_ref)              # (M, d_state)

    dt = _softplus(dt_raw + dtbias_ref[...])             # (M, nheads) f32
    A = -jnp.exp(alog_ref[...])                          # (1, nheads) f32

    # ---- segmented inclusive cumsum of dt within each sequence --------------
    cumdt = dt
    s = 1
    while s < L:                                         # Hillis-Steele, XLU rolls
        shifted = pltpu.roll(cumdt, shift=s, axis=0)
        cumdt = cumdt + jnp.where(t_in_seq >= s, shifted, 0.0)
        s *= 2

    # factored decay: exp(A(cumdt_t - cumdt_s)) * dt_s = f1[t] * g2[s]
    f1 = jnp.exp(A * cumdt)                              # (M, nheads), in (0, 1]
    g2 = jnp.exp(-A * cumdt) * dt                        # (M, nheads)

    # ---- shared masked Gram matrix G[b,t,s] = C_t . B_s (per sequence) ------
    c3 = c_act.reshape(bt, L, d_state).astype(jnp.bfloat16)
    b3 = b_act.reshape(bt, L, d_state).astype(jnp.bfloat16)
    G = jnp.einsum('btn,bsn->bts', c3, b3, preferred_element_type=jnp.float32)
    t_idx = jax.lax.broadcasted_iota(jnp.int32, (L, L), 0)
    s_idx = jax.lax.broadcasted_iota(jnp.int32, (L, L), 1)
    Gm = jnp.where((t_idx >= s_idx)[None, :, :], G, 0.0).astype(jnp.bfloat16)

    # ---- y_h = diag(f1_h) (Gm @ (diag(g2_h) x_h)) + D_h x_h ------------------
    for h in range(nheads):                              # static, small
        x_h = x_act[:, h * headdim:(h + 1) * headdim]    # (M, headdim)
        xs = (x_h * g2[:, h:h + 1]).astype(jnp.bfloat16).reshape(bt, L, headdim)
        y_h = jnp.einsum('bts,bsh->bth', Gm, xs,
                         preferred_element_type=jnp.float32).reshape(M, headdim)
        y_h = y_h * f1[:, h:h + 1] + dskip_ref[:, h:h + 1] * x_h
        yacc_ref[:, h * headdim:(h + 1) * headdim] = y_h

    # ---- gated RMSNorm: rmsnorm(y * silu(z)) * weight ------------------------
    y = yacc_ref[...]
    yz = y * _silu(z)
    var = jnp.mean(yz * yz, axis=-1, keepdims=True)
    y_norm = (yz * jax.lax.rsqrt(var + eps) * rmsw_ref[...]).astype(jnp.bfloat16)

    # ---- output projection (bf16 MXU, lane-dense padded feature dim) --------
    out = jnp.dot(y_norm, wout_ref[...], preferred_element_type=jnp.float32)  # (M, Dp)
    out_ref[...] = out.reshape(bt, L, Dp).astype(out_ref.dtype)


# --------------------------- parameter prep --------------------------------
def _round_up(x, m):
    return ((x + m - 1) // m) * m


def prepare_layer_params(p, D, Dp, d_inner, d_state):
    """Split xBC / conv params, zero-pad the K dim to Dp, cast big mats to bf16."""
    bf = jnp.bfloat16

    def pad_k(w):                                        # (D, N) -> (Dp, N)
        return jnp.pad(w, ((0, Dp - D), (0, 0)))

    wxbc = p["wxbc"]
    wx = wxbc[:, :d_inner]
    wB = wxbc[:, d_inner:d_inner + d_state]
    wC = wxbc[:, d_inner + d_state:]
    convw, convb = p["convw"], p["convb"]
    cwx = convw[:, :d_inner]
    cwB = convw[:, d_inner:d_inner + d_state]
    cwC = convw[:, d_inner + d_state:]
    cbx = convb[:d_inner]
    cbB = convb[d_inner:d_inner + d_state]
    cbC = convb[d_inner + d_state:]
    return dict(
        wz=pad_k(p["wz"]).astype(bf), wx=pad_k(wx).astype(bf),
        wB=pad_k(wB).astype(bf), wC=pad_k(wC).astype(bf),
        wdt=pad_k(p["wdt"]).astype(jnp.float32),          # dt path stays f32
        cwx=cwx, cwB=cwB, cwC=cwC,
        cbx=cbx.reshape(1, -1), cbB=cbB.reshape(1, -1), cbC=cbC.reshape(1, -1),
        A_log=p["A_log"].reshape(1, -1), dt_bias=p["dt_bias"].reshape(1, -1),
        Dskip=p["D"].reshape(1, -1), rmsw=p["rmsw"].reshape(1, -1),
        wout=jnp.pad(p["wout"], ((0, 0), (0, Dp - D))).astype(bf),
    )


# --------------------------- pallas wrapper --------------------------------
def mamba2_block_pallas(u_pad, pp, *, nheads, headdim, eps=1e-5):
    B, L, Dp = u_pad.shape
    # >=2 batch tiles (v7x megacore) only when each tile still folds >=128 rows
    # into the matmul M dim; otherwise keep the whole batch in one grid step.
    n_tiles = 2 if (B % 2 == 0 and (B // 2) * L >= 128) else 1
    bt = B // n_tiles
    M = bt * L
    d_inner = pp["wx"].shape[1]

    kernel = functools.partial(_mamba2_block_kernel, nheads=nheads,
                               headdim=headdim, eps=eps)

    weights = (pp["wz"], pp["wx"], pp["wB"], pp["wC"], pp["wdt"],
               pp["cwx"], pp["cwB"], pp["cwC"], pp["cbx"], pp["cbB"], pp["cbC"],
               pp["A_log"], pp["dt_bias"], pp["Dskip"], pp["rmsw"], pp["wout"])

    def _full_spec(arr):
        nd = arr.ndim
        return pl.BlockSpec(arr.shape, lambda b, _nd=nd: (0,) * _nd)

    in_specs = ([pl.BlockSpec((bt, L, Dp), lambda b: (b, 0, 0))] +
                [_full_spec(w) for w in weights])

    return pl.pallas_call(
        kernel,
        out_shape=jax.ShapeDtypeStruct((B, L, Dp), u_pad.dtype),
        grid=(n_tiles,),
        in_specs=in_specs,
        out_specs=pl.BlockSpec((bt, L, Dp), lambda b: (b, 0, 0)),
        scratch_shapes=[pltpu.VMEM((M, d_inner), jnp.float32)],
        compiler_params=pltpu.CompilerParams(
            dimension_semantics=("parallel",),
            vmem_limit_bytes=64 * 1024 * 1024),
    )(u_pad, *weights)


def mamba_llama_networking_head_forward(inputs_embeds, layer_params, *, d_state,
                                        d_conv, expand, headdim,
                                        output_hidden_states=True):
    """Mirrors MambaLlamaNetworkingHeadModel.forward with networking_head=None."""
    del d_conv  # implied by the conv weight shapes
    B, L, D = inputs_embeds.shape
    d_inner = expand * D
    nheads = d_inner // headdim
    Dp = max(128, _round_up(D, 128))                     # lane-dense feature dim
    prepared = [prepare_layer_params(p, D, Dp, d_inner, d_state)
                for p in layer_params]

    hidden_p = jnp.pad(inputs_embeds, ((0, 0), (0, 0), (0, Dp - D)))
    all_hidden = [] if output_hidden_states else None
    for pp in prepared:
        hidden_p = mamba2_block_pallas(hidden_p, pp, nheads=nheads,
                                       headdim=headdim)
        if output_hidden_states:
            all_hidden.append(hidden_p[..., :D])
    prediction = hidden_p[..., :D]                       # identity networking head
    return prediction, (tuple(all_hidden) if output_hidden_states else None)


# --------------------- pure-JAX reference (sequential scan) -----------------
def _mamba2_block_ref(u, p, *, d_inner, d_state, nheads, headdim, d_conv,
                      eps=1e-5):
    L = u.shape[0]
    conv_dim = d_inner + 2 * d_state
    z = u @ p["wz"]
    xBC = u @ p["wxbc"]
    dt_raw = u @ p["wdt"]
    xp = jnp.concatenate([jnp.zeros((d_conv - 1, conv_dim), u.dtype), xBC], axis=0)
    conv = sum(xp[k:k + L, :] * p["convw"][k] for k in range(d_conv)) + p["convb"]
    xBCa = jax.nn.silu(conv)
    x = xBCa[:, :d_inner].reshape(L, nheads, headdim)
    Bm = xBCa[:, d_inner:d_inner + d_state]
    Cm = xBCa[:, d_inner + d_state:]
    dt = jax.nn.softplus(dt_raw + p["dt_bias"])
    A = -jnp.exp(p["A_log"])

    def step(h, inp):
        x_t, B_t, C_t, dt_t = inp
        dA = jnp.exp(dt_t * A)                               # (nheads,)
        h = h * dA[:, None, None] + (dt_t[:, None] * x_t)[:, :, None] * B_t[None, None, :]
        y_t = jnp.einsum('hpn,n->hp', h, C_t) + p["D"][:, None] * x_t
        return h, y_t

    h0 = jnp.zeros((nheads, headdim, d_state), jnp.float32)
    _, ys = jax.lax.scan(step, h0, (x, Bm, Cm, dt))
    y = ys.reshape(L, d_inner)
    yz = y * jax.nn.silu(z)
    yn = yz * jax.lax.rsqrt(jnp.mean(yz * yz, axis=-1, keepdims=True) + eps) * p["rmsw"]
    return yn @ p["wout"]


def forward_ref(inputs_embeds, layer_params, **dims):
    hidden = inputs_embeds
    for p in layer_params:
        hidden = jax.vmap(lambda u, _p=p: _mamba2_block_ref(u, _p, **dims))(hidden)
    return hidden


# ----------------------- deterministic parameter init ----------------------
def init_params(key, num_layers, d_model, d_inner, d_state, nheads, d_conv):
    conv_dim = d_inner + 2 * d_state
    layers = []
    for l in range(num_layers):
        k = jax.random.fold_in(key, l)
        ks = jax.random.split(k, 7)
        s_in = 1.0 / np.sqrt(d_model)
        wz = jax.random.normal(ks[0], (d_model, d_inner), jnp.float32) * s_in
        wxbc = jax.random.normal(ks[1], (d_model, conv_dim), jnp.float32) * s_in
        wdt = jax.random.normal(ks[2], (d_model, nheads), jnp.float32) * s_in
        convw = jax.random.normal(ks[3], (d_conv, conv_dim), jnp.float32) * (1.0 / np.sqrt(d_conv))
        convb = jnp.zeros((conv_dim,), jnp.float32)
        A_init = jax.random.uniform(ks[4], (nheads,), jnp.float32, minval=1.0, maxval=16.0)
        A_log = jnp.log(A_init)
        dt0 = jax.random.uniform(ks[5], (nheads,), jnp.float32, minval=1e-3, maxval=0.1)
        dt_bias = dt0 + jnp.log(-jnp.expm1(-dt0))   # inverse softplus
        Dskip = jnp.ones((nheads,), jnp.float32)
        rmsw = jnp.ones((d_inner,), jnp.float32)
        wout = jax.random.normal(ks[6], (d_inner, d_model), jnp.float32) * (1.0 / np.sqrt(d_inner))
        layers.append(dict(wz=wz, wxbc=wxbc, wdt=wdt, convw=convw, convb=convb,
                           A_log=A_log, dt_bias=dt_bias, D=Dskip, rmsw=rmsw,
                           wout=wout))
    return layers


# --------------------------------- main -------------------------------------
if __name__ == "__main__":
    # config: hidden_size=32, num_hidden_layers=2, d_state=64, d_conv=4, expand=2
    B, L, D = 2, 8, 32
    num_layers = 2
    d_state, d_conv, expand, headdim = 64, 4, 2, 64
    d_inner = expand * D
    nheads = d_inner // headdim          # = 1

    key = jax.random.PRNGKey(0)
    kx, kp = jax.random.split(key)
    inputs_embeds = jax.random.normal(kx, (B, L, D), jnp.float32)
    params = init_params(kp, num_layers, D, d_inner, d_state, nheads, d_conv)

    logits, all_hidden_states = mamba_llama_networking_head_forward(
        inputs_embeds, params, d_state=d_state, d_conv=d_conv, expand=expand,
        headdim=headdim, output_hidden_states=True)
    jax.block_until_ready(logits)

    ref = forward_ref(inputs_embeds, params, d_inner=d_inner, d_state=d_state,
                      nheads=nheads, headdim=headdim, d_conv=d_conv)
    # bf16 MXU inputs with f32 accumulation over 2 layers -> slightly looser tol
    np.testing.assert_allclose(np.asarray(logits), np.asarray(ref),
                               atol=5e-2, rtol=5e-2)
    assert len(all_hidden_states) == num_layers
    assert all_hidden_states[-1].shape == (B, L, D)
    print("KERNEL_OK")
</pallas_src>

<mosaic_0001>
module attributes {stable_mosaic.version = 11 : i64} {
  func.func @_mamba2_block_kernel(%arg0: i32, %arg1: memref<2x8x128xf32, #tpu.memory_space<vmem>>, %arg2: memref<128x64xbf16, #tpu.memory_space<vmem>>, %arg3: memref<128x64xbf16, #tpu.memory_space<vmem>>, %arg4: memref<128x64xbf16, #tpu.memory_space<vmem>>, %arg5: memref<128x64xbf16, #tpu.memory_space<vmem>>, %arg6: memref<128x1xf32, #tpu.memory_space<vmem>>, %arg7: memref<4x64xf32, #tpu.memory_space<vmem>>, %arg8: memref<4x64xf32, #tpu.memory_space<vmem>>, %arg9: memref<4x64xf32, #tpu.memory_space<vmem>>, %arg10: memref<1x64xf32, #tpu.memory_space<vmem>>, %arg11: memref<1x64xf32, #tpu.memory_space<vmem>>, %arg12: memref<1x64xf32, #tpu.memory_space<vmem>>, %arg13: memref<1x1xf32, #tpu.memory_space<vmem>>, %arg14: memref<1x1xf32, #tpu.memory_space<vmem>>, %arg15: memref<1x1xf32, #tpu.memory_space<vmem>>, %arg16: memref<1x64xf32, #tpu.memory_space<vmem>>, %arg17: memref<64x128xbf16, #tpu.memory_space<vmem>>, %arg18: memref<2x8x128xf32, #tpu.memory_space<vmem>>, %arg19: memref<16x64xf32, #tpu.memory_space<vmem>>) attributes {dimension_semantics = [#tpu.dimension_semantics<parallel>], iteration_bounds = array<i64: 1>, scalar_prefetch = 0 : i64, scratch_operands = 1 : i64, tpu.core_type = #tpu.core_type<tc>, window_params = [{transform_indices = @transform_0, window_bounds = array<i64: 2, 8, 128>}, {pipeline_mode = #tpu.pipeline_mode<synchronous>, transform_indices = @transform_1, window_bounds = array<i64: 128, 64>}, {pipeline_mode = #tpu.pipeline_mode<synchronous>, transform_indices = @transform_2, window_bounds = array<i64: 128, 64>}, {pipeline_mode = #tpu.pipeline_mode<synchronous>, transform_indices = @transform_3, window_bounds = array<i64: 128, 64>}, {pipeline_mode = #tpu.pipeline_mode<synchronous>, transform_indices = @transform_4, window_bounds = array<i64: 128, 64>}, {pipeline_mode = #tpu.pipeline_mode<synchronous>, transform_indices = @transform_5, window_bounds = array<i64: 128, 1>}, {pipeline_mode = #tpu.pipeline_mode<synchronous>, transform_indices = @transform_6, window_bounds = array<i64: 4, 64>}, {pipeline_mode = #tpu.pipeline_mode<synchronous>, transform_indices = @transform_7, window_bounds = array<i64: 4, 64>}, {pipeline_mode = #tpu.pipeline_mode<synchronous>, transform_indices = @transform_8, window_bounds = array<i64: 4, 64>}, {pipeline_mode = #tpu.pipeline_mode<synchronous>, transform_indices = @transform_9, window_bounds = array<i64: 1, 64>}, {pipeline_mode = #tpu.pipeline_mode<synchronous>, transform_indices = @transform_10, window_bounds = array<i64: 1, 64>}, {pipeline_mode = #tpu.pipeline_mode<synchronous>, transform_indices = @transform_11, window_bounds = array<i64: 1, 64>}, {pipeline_mode = #tpu.pipeline_mode<synchronous>, transform_indices = @transform_12, window_bounds = array<i64: 1, 1>}, {pipeline_mode = #tpu.pipeline_mode<synchronous>, transform_indices = @transform_13, window_bounds = array<i64: 1, 1>}, {pipeline_mode = #tpu.pipeline_mode<synchronous>, transform_indices = @transform_14, window_bounds = array<i64: 1, 1>}, {pipeline_mode = #tpu.pipeline_mode<synchronous>, transform_indices = @transform_15, window_bounds = array<i64: 1, 64>}, {pipeline_mode = #tpu.pipeline_mode<synchronous>, transform_indices = @transform_16, window_bounds = array<i64: 64, 128>}, {transform_indices = @transform_17, window_bounds = array<i64: 2, 8, 128>}]} {
    %c0 = arith.constant 0 : index
    %c0_0 = arith.constant 0 : index
    %c0_1 = arith.constant 0 : index
    %0 = vector.load %arg1[%c0, %c0_0, %c0_1] : memref<2x8x128xf32, #tpu.memory_space<vmem>>, vector<2x8x128xf32>
    %1 = vector.shape_cast %0 : vector<2x8x128xf32> to vector<16x128xf32>
    %2 = arith.truncf %1 : vector<16x128xf32> to vector<16x128xbf16>
    %3 = tpu.iota {dimensions = array<i32: 0>} : vector<16x1xi32>
    %c8_i32 = arith.constant 8 : i32
    %c0_i32 = arith.constant 0 : i32
    %4 = arith.cmpi eq, %c8_i32, %c0_i32 : i32
    %c1_i32 = arith.constant 1 : i32
    %5 = arith.select %4, %c1_i32, %c8_i32 : i32
    %6 = vector.broadcast %5 : i32 to vector<16x1xi32>
    %7 = arith.remsi %3, %6 : vector<16x1xi32>
    %c0_i32_2 = arith.constant 0 : i32
    %8 = vector.broadcast %c0_i32_2 : i32 to vector<16x1xi32>
    %9 = arith.cmpi ne, %7, %8 : vector<16x1xi32>
    %c0_i32_3 = arith.constant 0 : i32
    %10 = vector.broadcast %c0_i32_3 : i32 to vector<16x1xi32>
    %11 = arith.cmpi slt, %7, %10 : vector<16x1xi32>
    %c0_i32_4 = arith.constant 0 : i32
    %12 = arith.cmpi slt, %5, %c0_i32_4 : i32
    %13 = vector.broadcast %12 : i1 to vector<16x1xi1>
    %14 = vector.broadcast %13 : vector<16x1xi1> to vector<16x1xi1>
    %15 = arith.xori %11, %14 : vector<16x1xi1>
    %16 = arith.andi %15, %9 : vector<16x1xi1>
    %17 = vector.broadcast %5 : i32 to vector<16x1xi32>
    %18 = arith.addi %7, %17 : vector<16x1xi32>
    %19 = arith.select %16, %18, %7 : vector<16x1xi1>, vector<16x1xi32>
    %c0_5 = arith.constant 0 : index
    %c0_6 = arith.constant 0 : index
    %20 = vector.load %arg2[%c0_5, %c0_6] : memref<128x64xbf16, #tpu.memory_space<vmem>>, vector<128x64xbf16>
    %cst = arith.constant dense<0.000000e+00> : vector<16x64xf32>
    %21 = tpu.matmul %2, %20, %cst {dimension_numbers = #tpu.dot_dimension_numbers<[1], [0], [0], [1], [0, 0, 1, 1], [], []>} : vector<16x128xbf16>, vector<128x64xbf16>, vector<16x64xf32> -> vector<16x64xf32>
    %c0_7 = arith.constant 0 : index
    %c0_8 = arith.constant 0 : index
    %22 = vector.load %arg3[%c0_7, %c0_8] : memref<128x64xbf16, #tpu.memory_space<vmem>>, vector<128x64xbf16>
    %cst_9 = arith.constant dense<0.000000e+00> : vector<16x64xf32>
    %23 = tpu.matmul %2, %22, %cst_9 {dimension_numbers = #tpu.dot_dimension_numbers<[1], [0], [0], [1], [0, 0, 1, 1], [], []>} : vector<16x128xbf16>, vector<128x64xbf16>, vector<16x64xf32> -> vector<16x64xf32>
    %c0_10 = arith.constant 0 : index
    %c0_11 = arith.constant 0 : index
    %24 = vector.load %arg4[%c0_10, %c0_11] : memref<128x64xbf16, #tpu.memory_space<vmem>>, vector<128x64xbf16>
    %cst_12 = arith.constant dense<0.000000e+00> : vector<16x64xf32>
    %25 = tpu.matmul %2, %24, %cst_12 {dimension_numbers = #tpu.dot_dimension_numbers<[1], [0], [0], [1], [0, 0, 1, 1], [], []>} : vector<16x128xbf16>, vector<128x64xbf16>, vector<16x64xf32> -> vector<16x64xf32>
    %c0_13 = arith.constant 0 : index
    %c0_14 = arith.constant 0 : index
    %26 = vector.load %arg5[%c0_13, %c0_14] : memref<128x64xbf16, #tpu.memory_space<vmem>>, vector<128x64xbf16>
    %cst_15 = arith.constant dense<0.000000e+00> : vector<16x64xf32>
    %27 = tpu.matmul %2, %26, %cst_15 {dimension_numbers = #tpu.dot_dimension_numbers<[1], [0], [0], [1], [0, 0, 1, 1], [], []>} : vector<16x128xbf16>, vector<128x64xbf16>, vector<16x64xf32> -> vector<16x64xf32>
    %c0_16 = arith.constant 0 : index
    %c0_17 = arith.constant 0 : index
    %28 = vector.load %arg6[%c0_16, %c0_17] : memref<128x1xf32, #tpu.memory_space<vmem>>, vector<128x1xf32>
    %cst_18 = arith.constant dense<0.000000e+00> : vector<16x1xf32>
    %29 = tpu.matmul %1, %28, %cst_18 {dimension_numbers = #tpu.dot_dimension_numbers<[1], [0], [0], [1], [0, 0, 1, 1], [], []>} : vector<16x128xf32>, vector<128x1xf32>, vector<16x1xf32> -> vector<16x1xf32>
    %c0_19 = arith.constant 0 : index
    %c0_20 = arith.constant 0 : index
    %30 = vector.load %arg7[%c0_19, %c0_20] : memref<4x64xf32, #tpu.memory_space<vmem>>, vector<4x64xf32>
    %31 = vector.extract_strided_slice %30 {offsets = [3, 0], sizes = [1, 64], strides = [1, 1]} : vector<4x64xf32> to vector<1x64xf32>
    %32 = vector.broadcast %31 : vector<1x64xf32> to vector<16x64xf32>
    %33 = arith.mulf %23, %32 : vector<16x64xf32>
    %c3_i32 = arith.constant 3 : i32
    %34 = tpu.dynamic_rotate %23 by %c3_i32 dim 0 : vector<16x64xf32>, i32 -> vector<16x64xf32>
    %c3_i32_21 = arith.constant 3 : i32
    %35 = vector.broadcast %c3_i32_21 : i32 to vector<16x1xi32>
    %36 = arith.cmpi sge, %19, %35 : vector<16x1xi32>
    %cst_22 = arith.constant 0.000000e+00 : f32
    %37 = vector.shape_cast %36 : vector<16x1xi1> to vector<16x1xi1>
    %38 = vector.broadcast %37 : vector<16x1xi1> to vector<16x64xi1>
    %39 = vector.broadcast %cst_22 : f32 to vector<16x64xf32>
    %40 = arith.select %38, %34, %39 : vector<16x64xi1>, vector<16x64xf32>
    %41 = vector.extract_strided_slice %30 {offsets = [0, 0], sizes = [1, 64], strides = [1, 1]} : vector<4x64xf32> to vector<1x64xf32>
    %42 = vector.broadcast %41 : vector<1x64xf32> to vector<16x64xf32>
    %43 = arith.mulf %40, %42 : vector<16x64xf32>
    %44 = arith.addf %33, %43 : vector<16x64xf32>
    %c2_i32 = arith.constant 2 : i32
    %45 = tpu.dynamic_rotate %23 by %c2_i32 dim 0 : vector<16x64xf32>, i32 -> vector<16x64xf32>
    %c2_i32_23 = arith.constant 2 : i32
    %46 = vector.broadcast %c2_i32_23 : i32 to vector<16x1xi32>
    %47 = arith.cmpi sge, %19, %46 : vector<16x1xi32>
    %cst_24 = arith.constant 0.000000e+00 : f32
    %48 = vector.shape_cast %47 : vector<16x1xi1> to vector<16x1xi1>
    %49 = vector.broadcast %48 : vector<16x1xi1> to vector<16x64xi1>
    %50 = vector.broadcast %cst_24 : f32 to vector<16x64xf32>
    %51 = arith.select %49, %45, %50 : vector<16x64xi1>, vector<16x64xf32>
    %52 = vector.extract_strided_slice %30 {offsets = [1, 0], sizes = [1, 64], strides = [1, 1]} : vector<4x64xf32> to vector<1x64xf32>
    %53 = vector.broadcast %52 : vector<1x64xf32> to vector<16x64xf32>
    %54 = arith.mulf %51, %53 : vector<16x64xf32>
    %55 = arith.addf %44, %54 : vector<16x64xf32>
    %c1_i32_25 = arith.constant 1 : i32
    %56 = tpu.dynamic_rotate %23 by %c1_i32_25 dim 0 : vector<16x64xf32>, i32 -> vector<16x64xf32>
    %c1_i32_26 = arith.constant 1 : i32
    %57 = vector.broadcast %c1_i32_26 : i32 to vector<16x1xi32>
    %58 = arith.cmpi sge, %19, %57 : vector<16x1xi32>
    %cst_27 = arith.constant 0.000000e+00 : f32
    %59 = vector.shape_cast %58 : vector<16x1xi1> to vector<16x1xi1>
    %60 = vector.broadcast %59 : vector<16x1xi1> to vector<16x64xi1>
    %61 = vector.broadcast %cst_27 : f32 to vector<16x64xf32>
    %62 = arith.select %60, %56, %61 : vector<16x64xi1>, vector<16x64xf32>
    %63 = vector.extract_strided_slice %30 {offsets = [2, 0], sizes = [1, 64], strides = [1, 1]} : vector<4x64xf32> to vector<1x64xf32>
    %64 = vector.broadcast %63 : vector<1x64xf32> to vector<16x64xf32>
    %65 = arith.mulf %62, %64 : vector<16x64xf32>
    %66 = arith.addf %55, %65 : vector<16x64xf32>
    %c0_28 = arith.constant 0 : index
    %c0_29 = arith.constant 0 : index
    %67 = vector.load %arg10[%c0_28, %c0_29] : memref<1x64xf32, #tpu.memory_space<vmem>>, vector<1x64xf32>
    %68 = vector.broadcast %67 : vector<1x64xf32> to vector<16x64xf32>
    %69 = arith.addf %66, %68 : vector<16x64xf32>
    %cst_30 = arith.constant 5.000000e-01 : f32
    %70 = vector.broadcast %cst_30 : f32 to vector<16x64xf32>
    %71 = arith.mulf %70, %69 : vector<16x64xf32>
    %72 = math.tanh %71 : vector<16x64xf32>
    %cst_31 = arith.constant 5.000000e-01 : f32
    %73 = vector.broadcast %cst_31 : f32 to vector<16x64xf32>
    %74 = arith.mulf %73, %72 : vector<16x64xf32>
    %cst_32 = arith.constant 5.000000e-01 : f32
    %75 = vector.broadcast %cst_32 : f32 to vector<16x64xf32>
    %76 = arith.addf %74, %75 : vector<16x64xf32>
    %77 = arith.mulf %69, %76 : vector<16x64xf32>
    %c0_33 = arith.constant 0 : index
    %c0_34 = arith.constant 0 : index
    %78 = vector.load %arg8[%c0_33, %c0_34] : memref<4x64xf32, #tpu.memory_space<vmem>>, vector<4x64xf32>
    %79 = vector.extract_strided_slice %78 {offsets = [3, 0], sizes = [1, 64], strides = [1, 1]} : vector<4x64xf32> to vector<1x64xf32>
    %80 = vector.broadcast %79 : vector<1x64xf32> to vector<16x64xf32>
    %81 = arith.mulf %25, %80 : vector<16x64xf32>
    %c3_i32_35 = arith.constant 3 : i32
    %82 = tpu.dynamic_rotate %25 by %c3_i32_35 dim 0 : vector<16x64xf32>, i32 -> vector<16x64xf32>
    %c3_i32_36 = arith.constant 3 : i32
    %83 = vector.broadcast %c3_i32_36 : i32 to vector<16x1xi32>
    %84 = arith.cmpi sge, %19, %83 : vector<16x1xi32>
    %cst_37 = arith.constant 0.000000e+00 : f32
    %85 = vector.shape_cast %84 : vector<16x1xi1> to vector<16x1xi1>
    %86 = vector.broadcast %85 : vector<16x1xi1> to vector<16x64xi1>
    %87 = vector.broadcast %cst_37 : f32 to vector<16x64xf32>
    %88 = arith.select %86, %82, %87 : vector<16x64xi1>, vector<16x64xf32>
    %89 = vector.extract_strided_slice %78 {offsets = [0, 0], sizes = [1, 64], strides = [1, 1]} : vector<4x64xf32> to vector<1x64xf32>
    %90 = vector.broadcast %89 : vector<1x64xf32> to vector<16x64xf32>
    %91 = arith.mulf %88, %90 : vector<16x64xf32>
    %92 = arith.addf %81, %91 : vector<16x64xf32>
    %c2_i32_38 = arith.constant 2 : i32
    %93 = tpu.dynamic_rotate %25 by %c2_i32_38 dim 0 : vector<16x64xf32>, i32 -> vector<16x64xf32>
    %c2_i32_39 = arith.constant 2 : i32
    %94 = vector.broadcast %c2_i32_39 : i32 to vector<16x1xi32>
    %95 = arith.cmpi sge, %19, %94 : vector<16x1xi32>
    %cst_40 = arith.constant 0.000000e+00 : f32
    %96 = vector.shape_cast %95 : vector<16x1xi1> to vector<16x1xi1>
    %97 = vector.broadcast %96 : vector<16x1xi1> to vector<16x64xi1>
    %98 = vector.broadcast %cst_40 : f32 to vector<16x64xf32>
    %99 = arith.select %97, %93, %98 : vector<16x64xi1>, vector<16x64xf32>
    %100 = vector.extract_strided_slice %78 {offsets = [1, 0], sizes = [1, 64], strides = [1, 1]} : vector<4x64xf32> to vector<1x64xf32>
    %101 = vector.broadcast %100 : vector<1x64xf32> to vector<16x64xf32>
    %102 = arith.mulf %99, %101 : vector<16x64xf32>
    %103 = arith.addf %92, %102 : vector<16x64xf32>
    %c1_i32_41 = arith.constant 1 : i32
    %104 = tpu.dynamic_rotate %25 by %c1_i32_41 dim 0 : vector<16x64xf32>, i32 -> vector<16x64xf32>
    %c1_i32_42 = arith.constant 1 : i32
    %105 = vector.broadcast %c1_i32_42 : i32 to vector<16x1xi32>
    %106 = arith.cmpi sge, %19, %105 : vector<16x1xi32>
    %cst_43 = arith.constant 0.000000e+00 : f32
    %107 = vector.shape_cast %106 : vector<16x1xi1> to vector<16x1xi1>
    %108 = vector.broadcast %107 : vector<16x1xi1> to vector<16x64xi1>
    %109 = vector.broadcast %cst_43 : f32 to vector<16x64xf32>
    %110 = arith.select %108, %104, %109 : vector<16x64xi1>, vector<16x64xf32>
    %111 = vector.extract_strided_slice %78 {offsets = [2, 0], sizes = [1, 64], strides = [1, 1]} : vector<4x64xf32> to vector<1x64xf32>
    %112 = vector.broadcast %111 : vector<1x64xf32> to vector<16x64xf32>
    %113 = arith.mulf %110, %112 : vector<16x64xf32>
    %114 = arith.addf %103, %113 : vector<16x64xf32>
    %c0_44 = arith.constant 0 : index
    %c0_45 = arith.constant 0 : index
    %115 = vector.load %arg11[%c0_44, %c0_45] : memref<1x64xf32, #tpu.memory_space<vmem>>, vector<1x64xf32>
    %116 = vector.broadcast %115 : vector<1x64xf32> to vector<16x64xf32>
    %117 = arith.addf %114, %116 : vector<16x64xf32>
    %cst_46 = arith.constant 5.000000e-01 : f32
    %118 = vector.broadcast %cst_46 : f32 to vector<16x64xf32>
    %119 = arith.mulf %118, %117 : vector<16x64xf32>
    %120 = math.tanh %119 : vector<16x64xf32>
    %cst_47 = arith.constant 5.000000e-01 : f32
    %121 = vector.broadcast %cst_47 : f32 to vector<16x64xf32>
    %122 = arith.mulf %121, %120 : vector<16x64xf32>
    %cst_48 = arith.constant 5.000000e-01 : f32
    %123 = vector.broadcast %cst_48 : f32 to vector<16x64xf32>
    %124 = arith.addf %122, %123 : vector<16x64xf32>
    %125 = arith.mulf %117, %124 : vector<16x64xf32>
    %c0_49 = arith.constant 0 : index
    %c0_50 = arith.constant 0 : index
    %126 = vector.load %arg9[%c0_49, %c0_50] : memref<4x64xf32, #tpu.memory_space<vmem>>, vector<4x64xf32>
    %127 = vector.extract_strided_slice %126 {offsets = [3, 0], sizes = [1, 64], strides = [1, 1]} : vector<4x64xf32> to vector<1x64xf32>
    %128 = vector.broadcast %127 : vector<1x64xf32> to vector<16x64xf32>
    %129 = arith.mulf %27, %128 : vector<16x64xf32>
    %c3_i32_51 = arith.constant 3 : i32
    %130 = tpu.dynamic_rotate %27 by %c3_i32_51 dim 0 : vector<16x64xf32>, i32 -> vector<16x64xf32>
    %c3_i32_52 = arith.constant 3 : i32
    %131 = vector.broadcast %c3_i32_52 : i32 to vector<16x1xi32>
    %132 = arith.cmpi sge, %19, %131 : vector<16x1xi32>
    %cst_53 = arith.constant 0.000000e+00 : f32
    %133 = vector.shape_cast %132 : vector<16x1xi1> to vector<16x1xi1>
    %134 = vector.broadcast %133 : vector<16x1xi1> to vector<16x64xi1>
    %135 = vector.broadcast %cst_53 : f32 to vector<16x64xf32>
    %136 = arith.select %134, %130, %135 : vector<16x64xi1>, vector<16x64xf32>
    %137 = vector.extract_strided_slice %126 {offsets = [0, 0], sizes = [1, 64], strides = [1, 1]} : vector<4x64xf32> to vector<1x64xf32>
    %138 = vector.broadcast %137 : vector<1x64xf32> to vector<16x64xf32>
    %139 = arith.mulf %136, %138 : vector<16x64xf32>
    %140 = arith.addf %129, %139 : vector<16x64xf32>
    %c2_i32_54 = arith.constant 2 : i32
    %141 = tpu.dynamic_rotate %27 by %c2_i32_54 dim 0 : vector<16x64xf32>, i32 -> vector<16x64xf32>
    %c2_i32_55 = arith.constant 2 : i32
    %142 = vector.broadcast %c2_i32_55 : i32 to vector<16x1xi32>
    %143 = arith.cmpi sge, %19, %142 : vector<16x1xi32>
    %cst_56 = arith.constant 0.000000e+00 : f32
    %144 = vector.shape_cast %143 : vector<16x1xi1> to vector<16x1xi1>
    %145 = vector.broadcast %144 : vector<16x1xi1> to vector<16x64xi1>
    %146 = vector.broadcast %cst_56 : f32 to vector<16x64xf32>
    %147 = arith.select %145, %141, %146 : vector<16x64xi1>, vector<16x64xf32>
    %148 = vector.extract_strided_slice %126 {offsets = [1, 0], sizes = [1, 64], strides = [1, 1]} : vector<4x64xf32> to vector<1x64xf32>
    %149 = vector.broadcast %148 : vector<1x64xf32> to vector<16x64xf32>
    %150 = arith.mulf %147, %149 : vector<16x64xf32>
    %151 = arith.addf %140, %150 : vector<16x64xf32>
    %c1_i32_57 = arith.constant 1 : i32
    %152 = tpu.dynamic_rotate %27 by %c1_i32_57 dim 0 : vector<16x64xf32>, i32 -> vector<16x64xf32>
    %c1_i32_58 = arith.constant 1 : i32
    %153 = vector.broadcast %c1_i32_58 : i32 to vector<16x1xi32>
    %154 = arith.cmpi sge, %19, %153 : vector<16x1xi32>
    %cst_59 = arith.constant 0.000000e+00 : f32
    %155 = vector.shape_cast %154 : vector<16x1xi1> to vector<16x1xi1>
    %156 = vector.broadcast %155 : vector<16x1xi1> to vector<16x64xi1>
    %157 = vector.broadcast %cst_59 : f32 to vector<16x64xf32>
    %158 = arith.select %156, %152, %157 : vector<16x64xi1>, vector<16x64xf32>
    %159 = vector.extract_strided_slice %126 {offsets = [2, 0], sizes = [1, 64], strides = [1, 1]} : vector<4x64xf32> to vector<1x64xf32>
    %160 = vector.broadcast %159 : vector<1x64xf32> to vector<16x64xf32>
    %161 = arith.mulf %158, %160 : vector<16x64xf32>
    %162 = arith.addf %151, %161 : vector<16x64xf32>
    %c0_60 = arith.constant 0 : index
    %c0_61 = arith.constant 0 : index
    %163 = vector.load %arg12[%c0_60, %c0_61] : memref<1x64xf32, #tpu.memory_space<vmem>>, vector<1x64xf32>
    %164 = vector.broadcast %163 : vector<1x64xf32> to vector<16x64xf32>
    %165 = arith.addf %162, %164 : vector<16x64xf32>
    %cst_62 = arith.constant 5.000000e-01 : f32
    %166 = vector.broadcast %cst_62 : f32 to vector<16x64xf32>
    %167 = arith.mulf %166, %165 : vector<16x64xf32>
    %168 = math.tanh %167 : vector<16x64xf32>
    %cst_63 = arith.constant 5.000000e-01 : f32
    %169 = vector.broadcast %cst_63 : f32 to vector<16x64xf32>
    %170 = arith.mulf %169, %168 : vector<16x64xf32>
    %cst_64 = arith.constant 5.000000e-01 : f32
    %171 = vector.broadcast %cst_64 : f32 to vector<16x64xf32>
    %172 = arith.addf %170, %171 : vector<16x64xf32>
    %173 = arith.mulf %165, %172 : vector<16x64xf32>
    %c0_65 = arith.constant 0 : index
    %c0_66 = arith.constant 0 : index
    %174 = vector.load %arg14[%c0_65, %c0_66] : memref<1x1xf32, #tpu.memory_space<vmem>>, vector<1x1xf32>
    %175 = vector.broadcast %174 : vector<1x1xf32> to vector<16x1xf32>
    %176 = arith.addf %29, %175 : vector<16x1xf32>
    %cst_67 = arith.constant 2.000000e+01 : f32
    %177 = vector.broadcast %cst_67 : f32 to vector<16x1xf32>
    %178 = arith.minimumf %176, %177 : vector<16x1xf32>
    %cst_68 = arith.constant 2.000000e+01 : f32
    %179 = vector.broadcast %cst_68 : f32 to vector<16x1xf32>
    %180 = arith.cmpf ogt, %176, %179 : vector<16x1xf32>
    %181 = math.exp %178 : vector<16x1xf32>
    %cst_69 = arith.constant 1.000000e+00 : f32
    %182 = vector.broadcast %cst_69 : f32 to vector<16x1xf32>
    %183 = arith.addf %182, %181 : vector<16x1xf32>
    %184 = math.log %183 : vector<16x1xf32>
    %185 = arith.select %180, %176, %184 : vector<16x1xi1>, vector<16x1xf32>
    %c0_70 = arith.constant 0 : index
    %c0_71 = arith.constant 0 : index
    %186 = vector.load %arg13[%c0_70, %c0_71] : memref<1x1xf32, #tpu.memory_space<vmem>>, vector<1x1xf32>
    %187 = math.exp %186 : vector<1x1xf32>
    %cst_72 = arith.constant 0.000000e+00 : f32
    %188 = vector.broadcast %cst_72 : f32 to vector<1x1xf32>
    %189 = arith.subf %188, %187 : vector<1x1xf32>
    %c1_i32_73 = arith.constant 1 : i32
    %190 = tpu.dynamic_rotate %185 by %c1_i32_73 dim 0 : vector<16x1xf32>, i32 -> vector<16x1xf32>
    %c1_i32_74 = arith.constant 1 : i32
    %191 = vector.broadcast %c1_i32_74 : i32 to vector<16x1xi32>
    %192 = arith.cmpi sge, %19, %191 : vector<16x1xi32>
    %cst_75 = arith.constant 0.000000e+00 : f32
    %193 = vector.broadcast %cst_75 : f32 to vector<16x1xf32>
    %194 = arith.select %192, %190, %193 : vector<16x1xi1>, vector<16x1xf32>
    %195 = arith.addf %185, %194 : vector<16x1xf32>
    %c2_i32_76 = arith.constant 2 : i32
    %196 = tpu.dynamic_rotate %195 by %c2_i32_76 dim 0 : vector<16x1xf32>, i32 -> vector<16x1xf32>
    %c2_i32_77 = arith.constant 2 : i32
    %197 = vector.broadcast %c2_i32_77 : i32 to vector<16x1xi32>
    %198 = arith.cmpi sge, %19, %197 : vector<16x1xi32>
    %cst_78 = arith.constant 0.000000e+00 : f32
    %199 = vector.broadcast %cst_78 : f32 to vector<16x1xf32>
    %200 = arith.select %198, %196, %199 : vector<16x1xi1>, vector<16x1xf32>
    %201 = arith.addf %195, %200 : vector<16x1xf32>
    %c4_i32 = arith.constant 4 : i32
    %202 = tpu.dynamic_rotate %201 by %c4_i32 dim 0 : vector<16x1xf32>, i32 -> vector<16x1xf32>
    %c4_i32_79 = arith.constant 4 : i32
    %203 = vector.broadcast %c4_i32_79 : i32 to vector<16x1xi32>
    %204 = arith.cmpi sge, %19, %203 : vector<16x1xi32>
    %cst_80 = arith.constant 0.000000e+00 : f32
    %205 = vector.broadcast %cst_80 : f32 to vector<16x1xf32>
    %206 = arith.select %204, %202, %205 : vector<16x1xi1>, vector<16x1xf32>
    %207 = arith.addf %201, %206 : vector<16x1xf32>
    %208 = vector.broadcast %189 : vector<1x1xf32> to vector<16x1xf32>
    %209 = arith.mulf %208, %207 : vector<16x1xf32>
    %210 = math.exp %209 : vector<16x1xf32>
    %cst_81 = arith.constant 0.000000e+00 : f32
    %211 = vector.broadcast %cst_81 : f32 to vector<1x1xf32>
    %212 = arith.subf %211, %189 : vector<1x1xf32>
    %213 = vector.broadcast %212 : vector<1x1xf32> to vector<16x1xf32>
    %214 = arith.mulf %213, %207 : vector<16x1xf32>
    %215 = math.exp %214 : vector<16x1xf32>
    %216 = arith.mulf %215, %185 : vector<16x1xf32>
    %217 = vector.shape_cast %173 : vector<16x64xf32> to vector<2x8x64xf32>
    %218 = arith.truncf %217 : vector<2x8x64xf32> to vector<2x8x64xbf16>
    %219 = vector.shape_cast %125 : vector<16x64xf32> to vector<2x8x64xf32>
    %220 = arith.truncf %219 : vector<2x8x64xf32> to vector<2x8x64xbf16>
    "tpu.trace_start"() <{level = 10 : i32, message = "btn,bsn->bts"}> : () -> ()
    %cst_82 = arith.constant dense<0.000000e+00> : vector<2x8x8xf32>
    %221 = tpu.matmul %218, %220, %cst_82 {dimension_numbers = #tpu.dot_dimension_numbers<[2], [2], [1], [1], [0, 0, 0, 1, 1, 1], [0], [0]>} : vector<2x8x64xbf16>, vector<2x8x64xbf16>, vector<2x8x8xf32> -> vector<2x8x8xf32>
    "tpu.trace_stop"() : () -> ()
    %222 = tpu.iota {dimensions = array<i32: 0>} : vector<8x8xi32>
    %223 = tpu.iota {dimensions = array<i32: 1>} : vector<8x8xi32>
    %224 = arith.cmpi sge, %222, %223 : vector<8x8xi32>
    %225 = vector.shape_cast %224 : vector<8x8xi1> to vector<1x8x8xi1>
    %cst_83 = arith.constant 0.000000e+00 : f32
    %226 = vector.shape_cast %225 : vector<1x8x8xi1> to vector<1x8x8xi1>
    %227 = vector.broadcast %226 : vector<1x8x8xi1> to vector<2x8x8xi1>
    %228 = vector.broadcast %cst_83 : f32 to vector<2x8x8xf32>
    %229 = arith.select %227, %221, %228 : vector<2x8x8xi1>, vector<2x8x8xf32>
    %230 = arith.truncf %229 : vector<2x8x8xf32> to vector<2x8x8xbf16>
    %231 = vector.broadcast %216 : vector<16x1xf32> to vector<16x64xf32>
    %232 = arith.mulf %77, %231 : vector<16x64xf32>
    %233 = arith.truncf %232 : vector<16x64xf32> to vector<16x64xbf16>
    %234 = vector.shape_cast %233 : vector<16x64xbf16> to vector<2x8x64xbf16>
    "tpu.trace_start"() <{level = 10 : i32, message = "bts,bsh->bth"}> : () -> ()
    %cst_84 = arith.constant dense<0.000000e+00> : vector<2x8x64xf32>
    %235 = tpu.matmul %230, %234, %cst_84 {dimension_numbers = #tpu.dot_dimension_numbers<[2], [1], [1], [2], [0, 0, 0, 1, 1, 2], [0], [0]>} : vector<2x8x8xbf16>, vector<2x8x64xbf16>, vector<2x8x64xf32> -> vector<2x8x64xf32>
    "tpu.trace_stop"() : () -> ()
    %236 = vector.shape_cast %235 : vector<2x8x64xf32> to vector<16x64xf32>
    %237 = vector.broadcast %210 : vector<16x1xf32> to vector<16x64xf32>
    %238 = arith.mulf %236, %237 : vector<16x64xf32>
    %c0_85 = arith.constant 0 : index
    %c0_86 = arith.constant 0 : index
    %239 = vector.load %arg15[%c0_85, %c0_86] : memref<1x1xf32, #tpu.memory_space<vmem>>, vector<1x1xf32>
    %240 = vector.broadcast %239 : vector<1x1xf32> to vector<16x64xf32>
    %241 = arith.mulf %240, %77 : vector<16x64xf32>
    %242 = arith.addf %238, %241 : vector<16x64xf32>
    %c0_87 = arith.constant 0 : index
    %c0_88 = arith.constant 0 : index
    %243 = vector.load %arg19[%c0_87, %c0_88] : memref<16x64xf32, #tpu.memory_space<vmem>>, vector<16x64xf32>
    tpu.vector_store %arg19[%c0_87, %c0_88], %242 {strides = array<i32>} : memref<16x64xf32, #tpu.memory_space<vmem>>, vector<16x64xf32>,
    %c0_89 = arith.constant 0 : index
    %c0_90 = arith.constant 0 : index
    %244 = vector.load %arg19[%c0_89, %c0_90] : memref<16x64xf32, #tpu.memory_space<vmem>>, vector<16x64xf32>
    %cst_91 = arith.constant 5.000000e-01 : f32
    %245 = vector.broadcast %cst_91 : f32 to vector<16x64xf32>
    %246 = arith.mulf %245, %21 : vector<16x64xf32>
    %247 = math.tanh %246 : vector<16x64xf32>
    %cst_92 = arith.constant 5.000000e-01 : f32
    %248 = vector.broadcast %cst_92 : f32 to vector<16x64xf32>
    %249 = arith.mulf %248, %247 : vector<16x64xf32>
    %cst_93 = arith.constant 5.000000e-01 : f32
    %250 = vector.broadcast %cst_93 : f32 to vector<16x64xf32>
    %251 = arith.addf %249, %250 : vector<16x64xf32>
    %252 = arith.mulf %21, %251 : vector<16x64xf32>
    %253 = arith.mulf %244, %252 : vector<16x64xf32>
    %254 = arith.mulf %253, %253 : vector<16x64xf32>
    %cst_94 = arith.constant dense<0.000000e+00> : vector<16xf32>
    %255 = vector.multi_reduction <add>, %254, %cst_94 [1] : vector<16x64xf32> to vector<16xf32>
    %256 = vector.shape_cast %255 : vector<16xf32> to vector<16x1xf32>
    %cst_95 = arith.constant 6.400000e+01 : f32
    %257 = vector.broadcast %cst_95 : f32 to vector<16x1xf32>
    %258 = arith.divf %256, %257 : vector<16x1xf32>
    %cst_96 = arith.constant 9.99999974E-6 : f32
    %259 = vector.broadcast %cst_96 : f32 to vector<16x1xf32>
    %260 = arith.addf %258, %259 : vector<16x1xf32>
    %261 = math.rsqrt %260 : vector<16x1xf32>
    %262 = vector.broadcast %261 : vector<16x1xf32> to vector<16x64xf32>
    %263 = arith.mulf %253, %262 : vector<16x64xf32>
    %c0_97 = arith.constant 0 : index
    %c0_98 = arith.constant 0 : index
    %264 = vector.load %arg16[%c0_97, %c0_98] : memref<1x64xf32, #tpu.memory_space<vmem>>, vector<1x64xf32>
    %265 = vector.broadcast %264 : vector<1x64xf32> to vector<16x64xf32>
    %266 = arith.mulf %263, %265 : vector<16x64xf32>
    %267 = arith.truncf %266 : vector<16x64xf32> to vector<16x64xbf16>
    %c0_99 = arith.constant 0 : index
    %c0_100 = arith.constant 0 : index
    %268 = vector.load %arg17[%c0_99, %c0_100] : memref<64x128xbf16, #tpu.memory_space<vmem>>, vector<64x128xbf16>
    %cst_101 = arith.constant dense<0.000000e+00> : vector<16x128xf32>
    %269 = tpu.matmul %267, %268, %cst_101 {dimension_numbers = #tpu.dot_dimension_numbers<[1], [0], [0], [1], [0, 0, 1, 1], [], []>} : vector<16x64xbf16>, vector<64x128xbf16>, vector<16x128xf32> -> vector<16x128xf32>
    %270 = vector.shape_cast %269 : vector<16x128xf32> to vector<2x8x128xf32>
    %c0_102 = arith.constant 0 : index
    %c0_103 = arith.constant 0 : index
    %c0_104 = arith.constant 0 : index
    %271 = vector.load %arg18[%c0_102, %c0_103, %c0_104] : memref<2x8x128xf32, #tpu.memory_space<vmem>>, vector<2x8x128xf32>
    tpu.vector_store %arg18[%c0_102, %c0_103, %c0_104], %270 {strides = array<i32>} : memref<2x8x128xf32, #tpu.memory_space<vmem>>, vector<2x8x128xf32>,
    return
  }
  func.func @transform_0(%arg0: i32) -> (i32, i32, i32) {
    %c0_i32 = arith.constant 0 : i32
    %c0_i32_0 = arith.constant 0 : i32
    %c0_i32_1 = arith.constant 0 : i32
    return %arg0, %c0_i32, %c0_i32_0 : i32, i32, i32
  }
  func.func @transform_1(%arg0: i32) -> (i32, i32) {
    %c0_i32 = arith.constant 0 : i32
    %c0_i32_0 = arith.constant 0 : i32
    %c0_i32_1 = arith.constant 0 : i32
    return %c0_i32, %c0_i32_0 : i32, i32
  }
  func.func @transform_2(%arg0: i32) -> (i32, i32) {
    %c0_i32 = arith.constant 0 : i32
    %c0_i32_0 = arith.constant 0 : i32
    %c0_i32_1 = arith.constant 0 : i32
    return %c0_i32, %c0_i32_0 : i32, i32
  }
  func.func @transform_3(%arg0: i32) -> (i32, i32) {
    %c0_i32 = arith.constant 0 : i32
    %c0_i32_0 = arith.constant 0 : i32
    %c0_i32_1 = arith.constant 0 : i32
    return %c0_i32, %c0_i32_0 : i32, i32
  }
  func.func @transform_4(%arg0: i32) -> (i32, i32) {
    %c0_i32 = arith.constant 0 : i32
    %c0_i32_0 = arith.constant 0 : i32
    %c0_i32_1 = arith.constant 0 : i32
    return %c0_i32, %c0_i32_0 : i32, i32
  }
  func.func @transform_5(%arg0: i32) -> (i32, i32) {
    %c0_i32 = arith.constant 0 : i32
    %c0_i32_0 = arith.constant 0 : i32
    %c0_i32_1 = arith.constant 0 : i32
    return %c0_i32, %c0_i32_0 : i32, i32
  }
  func.func @transform_6(%arg0: i32) -> (i32, i32) {
    %c0_i32 = arith.constant 0 : i32
    %c0_i32_0 = arith.constant 0 : i32
    %c0_i32_1 = arith.constant 0 : i32
    return %c0_i32, %c0_i32_0 : i32, i32
  }
  func.func @transform_7(%arg0: i32) -> (i32, i32) {
    %c0_i32 = arith.constant 0 : i32
    %c0_i32_0 = arith.constant 0 : i32
    %c0_i32_1 = arith.constant 0 : i32
    return %c0_i32, %c0_i32_0 : i32, i32
  }
  func.func @transform_8(%arg0: i32) -> (i32, i32) {
    %c0_i32 = arith.constant 0 : i32
    %c0_i32_0 = arith.constant 0 : i32
    %c0_i32_1 = arith.constant 0 : i32
    return %c0_i32, %c0_i32_0 : i32, i32
  }
  func.func @transform_9(%arg0: i32) -> (i32, i32) {
    %c0_i32 = arith.constant 0 : i32
    %c0_i32_0 = arith.constant 0 : i32
    %c0_i32_1 = arith.constant 0 : i32
    return %c0_i32, %c0_i32_0 : i32, i32
  }
  func.func @transform_10(%arg0: i32) -> (i32, i32) {
    %c0_i32 = arith.constant 0 : i32
    %c0_i32_0 = arith.constant 0 : i32
    %c0_i32_1 = arith.constant 0 : i32
    return %c0_i32, %c0_i32_0 : i32, i32
  }
  func.func @transform_11(%arg0: i32) -> (i32, i32) {
    %c0_i32 = arith.constant 0 : i32
    %c0_i32_0 = arith.constant 0 : i32
    %c0_i32_1 = arith.constant 0 : i32
    return %c0_i32, %c0_i32_0 : i32, i32
  }
  func.func @transform_12(%arg0: i32) -> (i32, i32) {
    %c0_i32 = arith.constant 0 : i32
    %c0_i32_0 = arith.constant 0 : i32
    %c0_i32_1 = arith.constant 0 : i32
    return %c0_i32, %c0_i32_0 : i32, i32
  }
  func.func @transform_13(%arg0: i32) -> (i32, i32) {
    %c0_i32 = arith.constant 0 : i32
    %c0_i32_0 = arith.constant 0 : i32
    %c0_i32_1 = arith.constant 0 : i32
    return %c0_i32, %c0_i32_0 : i32, i32
  }
  func.func @transform_14(%arg0: i32) -> (i32, i32) {
    %c0_i32 = arith.constant 0 : i32
    %c0_i32_0 = arith.constant 0 : i32
    %c0_i32_1 = arith.constant 0 : i32
    return %c0_i32, %c0_i32_0 : i32, i32
  }
  func.func @transform_15(%arg0: i32) -> (i32, i32) {
    %c0_i32 = arith.constant 0 : i32
    %c0_i32_0 = arith.constant 0 : i32
    %c0_i32_1 = arith.constant 0 : i32
    return %c0_i32, %c0_i32_0 : i32, i32
  }
  func.func @transform_16(%arg0: i32) -> (i32, i32) {
    %c0_i32 = arith.constant 0 : i32
    %c0_i32_0 = arith.constant 0 : i32
    %c0_i32_1 = arith.constant 0 : i32
    return %c0_i32, %c0_i32_0 : i32, i32
  }
  func.func @transform_17(%arg0: i32) -> (i32, i32, i32) {
    %c0_i32 = arith.constant 0 : i32
    %c0_i32_0 = arith.constant 0 : i32
    %c0_i32_1 = arith.constant 0 : i32
    return %arg0, %c0_i32, %c0_i32_0 : i32, i32, i32
  }
}

</mosaic_0001>

<llo_original>
// kernel: tpu_custom_call.1
$region0: #{tpu_custom_call.1}
  #allocation0 [shape = 'u32[]', space=smem, size = 0x4, offset = 0x4, fixed_abs, tag = 'smem constant byte address 0x4 - core index']
  #allocation1 [shape = 'u32[144,128]{1,0:T(1,128)}', space=vmem, size = 0x12000, scoped, tag = 'internal scratch']
  #allocation2 [shape = 'f32[16,64]{1,0:T(8,128)}', space=vmem, size = 0x2000, scoped, tag = 'scratch operand']
  #allocation3 [shape = 'f32[1,1]{1,0:T(1,128)S(1)}', space=vmem, size = 0x200, scoped, tag = 'scoped memory for tpu_custom_call.1']
  #allocation4 [shape = 'f32[1,1]{1,0:T(1,128)S(1)}', space=vmem, size = 0x200, scoped, tag = 'scoped memory for tpu_custom_call.1']
  #allocation5 [shape = 'f32[1,1]{1,0:T(1,128)S(1)}', space=vmem, size = 0x200, scoped, tag = 'scoped memory for tpu_custom_call.1']
  %s0 = inlined_call_operand.hbm [shape: f32[2,8,128], index: 0, kind: input, shape index: {}]
  %s1 = inlined_call_operand.hbm [shape: bf16[128,64], index: 1, kind: input, shape index: {}]
  %s2 = inlined_call_operand.hbm [shape: bf16[128,64], index: 2, kind: input, shape index: {}]
  %s3 = inlined_call_operand.hbm [shape: bf16[128,64], index: 3, kind: input, shape index: {}]
  %s4 = inlined_call_operand.hbm [shape: bf16[128,64], index: 4, kind: input, shape index: {}]
  %s5 = inlined_call_operand.hbm [shape: f32[128,1], index: 5, kind: input, shape index: {}]
  %s6 = inlined_call_operand.hbm [shape: f32[4,64], index: 6, kind: input, shape index: {}]
  %s7 = inlined_call_operand.hbm [shape: f32[4,64], index: 7, kind: input, shape index: {}]
  %s8 = inlined_call_operand.hbm [shape: f32[4,64], index: 8, kind: input, shape index: {}]
  %s9 = inlined_call_operand.hbm [shape: f32[1,64], index: 9, kind: input, shape index: {}]
  %s10 = inlined_call_operand.hbm [shape: f32[1,64], index: 10, kind: input, shape index: {}]
  %s11 = inlined_call_operand.hbm [shape: f32[1,64], index: 11, kind: input, shape index: {}]
  %s12 = inlined_call_operand.<no memory space> [shape: f32[1,1], index: 12, kind: input, shape index: {}]
  %s13 = inlined_call_operand.<no memory space> [shape: f32[1,1], index: 13, kind: input, shape index: {}]
  %s14 = inlined_call_operand.<no memory space> [shape: f32[1,1], index: 14, kind: input, shape index: {}]
  %s15 = inlined_call_operand.hbm [shape: f32[1,64], index: 15, kind: input, shape index: {}]
  %s16 = inlined_call_operand.hbm [shape: bf16[64,128], index: 16, kind: input, shape index: {}]
  %s17 = inlined_call_operand.hbm [shape: f32[2,8,128], index: 17, kind: output, shape index: {}]
  %s18 = sld [smem:[#allocation0]]
  $region134: #{tpu_custom_call.1} parent=0
    _
  %s20 = ssub.s32 1, %s18
  %s21 = scalar_select 0, %s20, %s18
  %v22 = vstv %s12
  %23 = vst [vmem:[#allocation3] sm:$0x1] %v22
  %v24 = vstv %s13
  %25 = vst [vmem:[#allocation4] sm:$0x1] %v24
  %v26 = vstv %s14
  %27 = vst [vmem:[#allocation5] sm:$0x1] %v26
  $region1: #{tpu_custom_call.1} parent=0
    #allocation6 [shape = 'u8[8192]{0}', space=vmem, size = 0x2000, scoped, tag = 'input window, operand 0, single buffered']
    #allocation7 [shape = 's32[1]{0}', space=sflag, size = 0x4, scoped, tag = 'scoped memory for tpu_custom_call.1']
    #allocation8 [shape = 's32[1]{0}', space=sflag, size = 0x4, scoped, tag = 'scoped memory for tpu_custom_call.1']
    #allocation9 [shape = 'u8[32768]{0}', space=vmem, size = 0x8000, scoped, tag = 'input window, operand 1, single buffered']
    #allocation10 [shape = 's32[1]{0}', space=sflag, size = 0x4, scoped, tag = 'scoped memory for tpu_custom_call.1']
    #allocation11 [shape = 'u8[32768]{0}', space=vmem, size = 0x8000, scoped, tag = 'input window, operand 2, single buffered']
    #allocation12 [shape = 'u8[32768]{0}', space=vmem, size = 0x8000, scoped, tag = 'input window, operand 3, single buffered']
    #allocation13 [shape = 's32[1]{0}', space=sflag, size = 0x4, scoped, tag = 'scoped memory for tpu_custom_call.1']
    #allocation14 [shape = 'u8[32768]{0}', space=vmem, size = 0x8000, scoped, tag = 'input window, operand 4, single buffered']
    #allocation15 [shape = 'u8[65536]{0}', space=vmem, size = 0x10000, scoped, tag = 'input window, operand 5, single buffered']
    #allocation16 [shape = 's32[1]{0}', space=sflag, size = 0x4, scoped, tag = 'scoped memory for tpu_custom_call.1']
    #allocation17 [shape = 'u8[2048]{0}', space=vmem, size = 0x800, scoped, tag = 'input window, operand 6, single buffered']
    #allocation18 [shape = 'u8[2048]{0}', space=vmem, size = 0x800, scoped, tag = 'input window, operand 7, single buffered']
    #allocation19 [shape = 's32[1]{0}', space=sflag, size = 0x4, scoped, tag = 'scoped memory for tpu_custom_call.1']
    #allocation20 [shape = 'u8[2048]{0}', space=vmem, size = 0x800, scoped, tag = 'input window, operand 8, single buffered']
    #allocation21 [shape = 'u8[512]{0}', space=vmem, size = 0x400, scoped, tag = 'input window, operand 9, single buffered']
    #allocation22 [shape = 's32[1]{0}', space=sflag, size = 0x4, scoped, tag = 'scoped memory for tpu_custom_call.1']
    #allocation23 [shape = 'u8[512]{0}', space=vmem, size = 0x400, scoped, tag = 'input window, operand 10, single buffered']
    #allocation24 [shape = 'u8[512]{0}', space=vmem, size = 0x400, scoped, tag = 'input window, operand 11, single buffered']
    #allocation25 [shape = 's32[1]{0}', space=sflag, size = 0x4, scoped, tag = 'scoped memory for tpu_custom_call.1']
    #allocation26 [shape = 'u8[512]{0}', space=vmem, size = 0x400, scoped, tag = 'input window, operand 15, single buffered']
    #allocation27 [shape = 'u8[16384]{0}', space=vmem, size = 0x4000, scoped, tag = 'input window, operand 16, single buffered']
    #allocation28 [shape = 's32[1]{0}', space=sflag, size = 0x4, scoped, tag = 'scoped memory for tpu_custom_call.1']
    #allocation29 [shape = 'u8[8192]{0}', space=vmem, size = 0x2000, scoped, tag = 'output window, operand 0, single buffered']
    %28 = vsyncpa [#allocation7], 0
    %29 = vsyncpa [#allocation10], 0
    %30 = vsyncpa [#allocation13], 0
    %31 = vsyncpa [#allocation16], 0
    %32 = vsyncpa [#allocation19], 0
    %33 = vsyncpa [#allocation22], 0
    %34 = vsyncpa [#allocation25], 0
    %35 = vsyncpa [#allocation28], 0
    %36 = vsyncpa [#allocation8], 0
    // Predicated region
    $region2: #{tpu_custom_call.1} parent=1 // pred_check
      _
    $region3: #{tpu_custom_call.1} parent=1 // pred_check_branch
      %38 = sbr.rel (0) target = $region5
    $region4: #{tpu_custom_call.1} parent=1 // pred_region
      %s40 = ssub.s32 256, 256
      %41 = vsyncadd [#allocation7], %s40
      %s42 = sshll.u32 [#allocation6], 4
      %s43 = int_to_ptr.vmem [resolvable:$true] %s42
      %48 = dma.hbm_to_vmem [thread:$0]  %s0, 256, %s43, [#allocation7], 128, 128, 8
    $region5: #{tpu_custom_call.1} parent=1 // pred_fallthru
      _
    // Predicated region
    $region6: #{tpu_custom_call.1} parent=1 // pred_check
      _
    $region7: #{tpu_custom_call.1} parent=1 // pred_check_branch
      %50 = sbr.rel (0) target = $region9
    $region8: #{tpu_custom_call.1} parent=1 // pred_region
      %s52 = ssub.s32 1024, 1024
      %53 = vsyncadd [#allocation10], %s52
      %s54 = sshll.u32 [#allocation9], 4
      %s55 = int_to_ptr.vmem [resolvable:$true] %s54
      %60 = dma.hbm_to_vmem [thread:$0]  %s1, 1024, %s55, [#allocation10], 64, 64, 4
    $region9: #{tpu_custom_call.1} parent=1 // pred_fallthru
      _
    // Predicated region
    $region10: #{tpu_custom_call.1} parent=1 // pred_check
      _
    $region11: #{tpu_custom_call.1} parent=1 // pred_check_branch
      %62 = sbr.rel (0) target = $region13
    $region12: #{tpu_custom_call.1} parent=1 // pred_region
      %s64 = ssub.s32 1024, 1024
      %65 = vsyncadd [#allocation10], %s64
      %s66 = sshll.u32 [#allocation11], 4
      %s67 = int_to_ptr.vmem [resolvable:$true] %s66
      %72 = dma.hbm_to_vmem [thread:$0]  %s2, 1024, %s67, [#allocation10], 64, 64, 4
    $region13: #{tpu_custom_call.1} parent=1 // pred_fallthru
      _
    // Predicated region
    $region14: #{tpu_custom_call.1} parent=1 // pred_check
      _
    $region15: #{tpu_custom_call.1} parent=1 // pred_check_branch
      %74 = sbr.rel (0) target = $region17
    $region16: #{tpu_custom_call.1} parent=1 // pred_region
      %s76 = ssub.s32 1024, 1024
      %77 = vsyncadd [#allocation13], %s76
      %s78 = sshll.u32 [#allocation12], 4
      %s79 = int_to_ptr.vmem [resolvable:$true] %s78
      %84 = dma.hbm_to_vmem [thread:$0]  %s3, 1024, %s79, [#allocation13], 64, 64, 4
    $region17: #{tpu_custom_call.1} parent=1 // pred_fallthru
      _
    // Predicated region
    $region18: #{tpu_custom_call.1} parent=1 // pred_check
      _
    $region19: #{tpu_custom_call.1} parent=1 // pred_check_branch
      %86 = sbr.rel (0) target = $region21
    $region20: #{tpu_custom_call.1} parent=1 // pred_region
      %s88 = ssub.s32 1024, 1024
      %89 = vsyncadd [#allocation13], %s88
      %s90 = sshll.u32 [#allocation14], 4
      %s91 = int_to_ptr.vmem [resolvable:$true] %s90
      %96 = dma.hbm_to_vmem [thread:$0]  %s4, 1024, %s91, [#allocation13], 64, 64, 4
    $region21: #{tpu_custom_call.1} parent=1 // pred_fallthru
      _
    // Predicated region
    $region22: #{tpu_custom_call.1} parent=1 // pred_check
      _
    $region23: #{tpu_custom_call.1} parent=1 // pred_check_branch
      %98 = sbr.rel (0) target = $region25
    $region24: #{tpu_custom_call.1} parent=1 // pred_region
      %s100 = ssub.s32 2048, 2048
      %101 = vsyncadd [#allocation16], %s100
      %s102 = sshll.u32 [#allocation15], 4
      %s103 = int_to_ptr.vmem [resolvable:$true] %s102
      %108 = dma.hbm_to_vmem [thread:$0]  %s5, 2048, %s103, [#allocation16], 128, 128, 8
    $region25: #{tpu_custom_call.1} parent=1 // pred_fallthru
      _
    // Predicated region
    $region26: #{tpu_custom_call.1} parent=1 // pred_check
      _
    $region27: #{tpu_custom_call.1} parent=1 // pred_check_branch
      %110 = sbr.rel (0) target = $region29
    $region28: #{tpu_custom_call.1} parent=1 // pred_region
      %s112 = ssub.s32 64, 64
      %113 = vsyncadd [#allocation16], %s112
      %s115 = sshll.u32 [#allocation17], 4
      %s116 = int_to_ptr.vmem [resolvable:$true] %s115
      %118 = dma.hbm_to_vmem [thread:$0]  %s6, 64, %s116, [#allocation16]
    $region29: #{tpu_custom_call.1} parent=1 // pred_fallthru
      _
    // Predicated region
    $region30: #{tpu_custom_call.1} parent=1 // pred_check
      _
    $region31: #{tpu_custom_call.1} parent=1 // pred_check_branch
      %120 = sbr.rel (0) target = $region33
    $region32: #{tpu_custom_call.1} parent=1 // pred_region
      %s122 = ssub.s32 64, 64
      %123 = vsyncadd [#allocation19], %s122
      %s125 = sshll.u32 [#allocation18], 4
      %s126 = int_to_ptr.vmem [resolvable:$true] %s125
      %128 = dma.hbm_to_vmem [thread:$0]  %s7, 64, %s126, [#allocation19]
    $region33: #{tpu_custom_call.1} parent=1 // pred_fallthru
      _
    // Predicated region
    $region34: #{tpu_custom_call.1} parent=1 // pred_check
      _
    $region35: #{tpu_custom_call.1} parent=1 // pred_check_branch
      %130 = sbr.rel (0) target = $region37
    $region36: #{tpu_custom_call.1} parent=1 // pred_region
      %s132 = ssub.s32 64, 64
      %133 = vsyncadd [#allocation19], %s132
      %s135 = sshll.u32 [#allocation20], 4
      %s136 = int_to_ptr.vmem [resolvable:$true] %s135
      %138 = dma.hbm_to_vmem [thread:$0]  %s8, 64, %s136, [#allocation19]
    $region37: #{tpu_custom_call.1} parent=1 // pred_fallthru
      _
    // Predicated region
    $region38: #{tpu_custom_call.1} parent=1 // pred_check
      _
    $region39: #{tpu_custom_call.1} parent=1 // pred_check_branch
      %140 = sbr.rel (0) target = $region41
    $region40: #{tpu_custom_call.1} parent=1 // pred_region
      %s142 = ssub.s32 16, 16
      %143 = vsyncadd [#allocation22], %s142
      %s145 = sshll.u32 [#allocation21], 4
      %s146 = int_to_ptr.vmem [resolvable:$true] %s145
      %148 = dma.hbm_to_vmem [thread:$0]  %s9, 16, %s146, [#allocation22]
    $region41: #{tpu_custom_call.1} parent=1 // pred_fallthru
      _
    // Predicated region
    $region42: #{tpu_custom_call.1} parent=1 // pred_check
      _
    $region43: #{tpu_custom_call.1} parent=1 // pred_check_branch
      %150 = sbr.rel (0) target = $region45
    $region44: #{tpu_custom_call.1} parent=1 // pred_region
      %s152 = ssub.s32 16, 16
      %153 = vsyncadd [#allocation22], %s152
      %s155 = sshll.u32 [#allocation23], 4
      %s156 = int_to_ptr.vmem [resolvable:$true] %s155
      %158 = dma.hbm_to_vmem [thread:$0]  %s10, 16, %s156, [#allocation22]
    $region45: #{tpu_custom_call.1} parent=1 // pred_fallthru
      _
    // Predicated region
    $region46: #{tpu_custom_call.1} parent=1 // pred_check
      _
    $region47: #{tpu_custom_call.1} parent=1 // pred_check_branch
      %160 = sbr.rel (0) target = $region49
    $region48: #{tpu_custom_call.1} parent=1 // pred_region
      %s162 = ssub.s32 16, 16
      %163 = vsyncadd [#allocation25], %s162
      %s165 = sshll.u32 [#allocation24], 4
      %s166 = int_to_ptr.vmem [resolvable:$true] %s165
      %168 = dma.hbm_to_vmem [thread:$0]  %s11, 16, %s166, [#allocation25]
    $region49: #{tpu_custom_call.1} parent=1 // pred_fallthru
      _
    // Predicated region
    $region50: #{tpu_custom_call.1} parent=1 // pred_check
      _
    $region51: #{tpu_custom_call.1} parent=1 // pred_check_branch
      %170 = sbr.rel (0) target = $region53
    $region52: #{tpu_custom_call.1} parent=1 // pred_region
      _
    $region53: #{tpu_custom_call.1} parent=1 // pred_fallthru
      _
    // Predicated region
    $region54: #{tpu_custom_call.1} parent=1 // pred_check
      _
    $region55: #{tpu_custom_call.1} parent=1 // pred_check_branch
      %172 = sbr.rel (0) target = $region57
    $region56: #{tpu_custom_call.1} parent=1 // pred_region
      _
    $region57: #{tpu_custom_call.1} parent=1 // pred_fallthru
      _
    // Predicated region
    $region58: #{tpu_custom_call.1} parent=1 // pred_check
      _
    $region59: #{tpu_custom_call.1} parent=1 // pred_check_branch
      %174 = sbr.rel (0) target = $region61
    $region60: #{tpu_custom_call.1} parent=1 // pred_region
      _
    $region61: #{tpu_custom_call.1} parent=1 // pred_fallthru
      _
    // Predicated region
    $region62: #{tpu_custom_call.1} parent=1 // pred_check
      _
    $region63: #{tpu_custom_call.1} parent=1 // pred_check_branch
      %176 = sbr.rel (0) target = $region65
    $region64: #{tpu_custom_call.1} parent=1 // pred_region
      %s178 = ssub.s32 16, 16
      %179 = vsyncadd [#allocation25], %s178
      %s181 = sshll.u32 [#allocation26], 4
      %s182 = int_to_ptr.vmem [resolvable:$true] %s181
      %184 = dma.hbm_to_vmem [thread:$0]  %s15, 16, %s182, [#allocation25]
    $region65: #{tpu_custom_call.1} parent=1 // pred_fallthru
      _
    // Predicated region
    $region66: #{tpu_custom_call.1} parent=1 // pred_check
      _
    $region67: #{tpu_custom_call.1} parent=1 // pred_check_branch
      %186 = sbr.rel (0) target = $region69
    $region68: #{tpu_custom_call.1} parent=1 // pred_region
      %s188 = ssub.s32 512, 512
      %189 = vsyncadd [#allocation28], %s188
      %s190 = sshll.u32 [#allocation27], 4
      %s191 = int_to_ptr.vmem [resolvable:$true] %s190
      %196 = dma.hbm_to_vmem [thread:$0]  %s16, 512, %s191, [#allocation28], 64, 64, 4
    $region69: #{tpu_custom_call.1} parent=1 // pred_fallthru
      _
    // Predicated region
    $region70: #{tpu_custom_call.1} parent=1 // pred_check
      _
    $region71: #{tpu_custom_call.1} parent=1 // pred_check_branch
      %198 = sbr.rel (0) target = $region73
    $region72: #{tpu_custom_call.1} parent=1 // pred_region
      %199 = dma.done [#allocation7], 256
    $region73: #{tpu_custom_call.1} parent=1 // pred_fallthru
      _
    // Predicated region
    $region74: #{tpu_custom_call.1} parent=1 // pred_check
      _
    $region75: #{tpu_custom_call.1} parent=1 // pred_check_branch
      %201 = sbr.rel (0) target = $region77
    $region76: #{tpu_custom_call.1} parent=1 // pred_region
      %202 = dma.done [#allocation10], 1024
    $region77: #{tpu_custom_call.1} parent=1 // pred_fallthru
      _
    // Predicated region
    $region78: #{tpu_custom_call.1} parent=1 // pred_check
      _
    $region79: #{tpu_custom_call.1} parent=1 // pred_check_branch
      %204 = sbr.rel (0) target = $region81
    $region80: #{tpu_custom_call.1} parent=1 // pred_region
      %205 = dma.done [#allocation10], 1024
    $region81: #{tpu_custom_call.1} parent=1 // pred_fallthru
      _
    // Predicated region
    $region82: #{tpu_custom_call.1} parent=1 // pred_check
      _
    $region83: #{tpu_custom_call.1} parent=1 // pred_check_branch
      %207 = sbr.rel (0) target = $region85
    $region84: #{tpu_custom_call.1} parent=1 // pred_region
      %208 = dma.done [#allocation13], 1024
    $region85: #{tpu_custom_call.1} parent=1 // pred_fallthru
      _
    // Predicated region
    $region86: #{tpu_custom_call.1} parent=1 // pred_check
      _
    $region87: #{tpu_custom_call.1} parent=1 // pred_check_branch
      %210 = sbr.rel (0) target = $region89
    $region88: #{tpu_custom_call.1} parent=1 // pred_region
      %211 = dma.done [#allocation13], 1024
    $region89: #{tpu_custom_call.1} parent=1 // pred_fallthru
      _
    // Predicated region
    $region90: #{tpu_custom_call.1} parent=1 // pred_check
      _
    $region91: #{tpu_custom_call.1} parent=1 // pred_check_branch
      %213 = sbr.rel (0) target = $region93
    $region92: #{tpu_custom_call.1} parent=1 // pred_region
      %214 = dma.done [#allocation16], 2048
    $region93: #{tpu_custom_call.1} parent=1 // pred_fallthru
      _
    // Predicated region
    $region94: #{tpu_custom_call.1} parent=1 // pred_check
      _
    $region95: #{tpu_custom_call.1} parent=1 // pred_check_branch
      %216 = sbr.rel (0) target = $region97
    $region96: #{tpu_custom_call.1} parent=1 // pred_region
      %217 = dma.done [#allocation16], 64
    $region97: #{tpu_custom_call.1} parent=1 // pred_fallthru
      _
    // Predicated region
    $region98: #{tpu_custom_call.1} parent=1 // pred_check
      _
    $region99: #{tpu_custom_call.1} parent=1 // pred_check_branch
      %219 = sbr.rel (0) target = $region101
    $region100: #{tpu_custom_call.1} parent=1 // pred_region
      %220 = dma.done [#allocation19], 64
    $region101: #{tpu_custom_call.1} parent=1 // pred_fallthru
      _
    // Predicated region
    $region102: #{tpu_custom_call.1} parent=1 // pred_check
      _
    $region103: #{tpu_custom_call.1} parent=1 // pred_check_branch
      %222 = sbr.rel (0) target = $region105
    $region104: #{tpu_custom_call.1} parent=1 // pred_region
      %223 = dma.done [#allocation19], 64
    $region105: #{tpu_custom_call.1} parent=1 // pred_fallthru
      _
    // Predicated region
    $region106: #{tpu_custom_call.1} parent=1 // pred_check
      _
    $region107: #{tpu_custom_call.1} parent=1 // pred_check_branch
      %225 = sbr.rel (0) target = $region109
    $region108: #{tpu_custom_call.1} parent=1 // pred_region
      %226 = dma.done [#allocation22], 16
    $region109: #{tpu_custom_call.1} parent=1 // pred_fallthru
      _
    // Predicated region
    $region110: #{tpu_custom_call.1} parent=1 // pred_check
      _
    $region111: #{tpu_custom_call.1} parent=1 // pred_check_branch
      %228 = sbr.rel (0) target = $region113
    $region112: #{tpu_custom_call.1} parent=1 // pred_region
      %229 = dma.done [#allocation22], 16
    $region113: #{tpu_custom_call.1} parent=1 // pred_fallthru
      _
    // Predicated region
    $region114: #{tpu_custom_call.1} parent=1 // pred_check
      _
    $region115: #{tpu_custom_call.1} parent=1 // pred_check_branch
      %231 = sbr.rel (0) target = $region117
    $region116: #{tpu_custom_call.1} parent=1 // pred_region
      %232 = dma.done [#allocation25], 16
    $region117: #{tpu_custom_call.1} parent=1 // pred_fallthru
      _
    // Predicated region
    $region118: #{tpu_custom_call.1} parent=1 // pred_check
      _
    $region119: #{tpu_custom_call.1} parent=1 // pred_check_branch
      %234 = sbr.rel (0) target = $region121
    $region120: #{tpu_custom_call.1} parent=1 // pred_region
      %235 = dma.done [#allocation25], 16
    $region121: #{tpu_custom_call.1} parent=1 // pred_fallthru
      _
    // Predicated region
    $region122: #{tpu_custom_call.1} parent=1 // pred_check
      _
    $region123: #{tpu_custom_call.1} parent=1 // pred_check_branch
      %237 = sbr.rel (0) target = $region125
    $region124: #{tpu_custom_call.1} parent=1 // pred_region
      %238 = dma.done [#allocation28], 512
    $region125: #{tpu_custom_call.1} parent=1 // pred_fallthru
      _
    %v240 = vld [vmem:[#allocation6] sm:$0xff]
    %v241 = vld [vmem:[#allocation6 + $0x8] sm:$0xff]
    %v242 = vpack.c.bf16 %v241, %v240
    %v243 = vlaneseq
    %v244 = vshrl.u32 %v243, 7
    %v245 = vadd.s32 %v244, 8
    %vm246 = vcmp.lt.s32.totalorder %v244, 0
    %v247 = vsub.s32 0, %v244
    %v248 = vsel %vm246, %v247, %v244
    %v249 = vshrl.u32 %v248, 3
    %v250 = vand.u32 %v248, 7
    %v251 = vsub.s32 0, %v250
    %v252 = vsel %vm246, %v251, %v250
    %vm253 = vcmp.lt.s32.totalorder %v245, 0
    %v254 = vsub.s32 0, %v245
    %v255 = vsel %vm253, %v254, %v245
    %v256 = vshrl.u32 %v255, 3
    %v257 = vand.u32 %v255, 7
    %v258 = vsub.s32 0, %v257
    %v259 = vsel %vm253, %v258, %v257
    %vm260 = vcmp.ne.s32.totalorder %v252, 0
    %vm261 = vcmp.ne.s32.totalorder %v259, 0
    %vm262 = vcmp.lt.s32.totalorder %v252, 0
    %vm263 = vcmp.lt.s32.totalorder %v259, 0
    %vm264 = vmand %vm262, %vm260
    %vm265 = vmand %vm263, %vm261
    %v266 = vadd.s32 %v252, 8
    %v267 = vadd.s32 %v259, 8
    %v268 = vsel %vm264, %v266, %v252
    %v269 = vsel %vm265, %v267, %v259
    %v270 = vld [vmem:[#allocation9] sm:$0xf]
    %v271 = vld [vmem:[#allocation9 + $0x4] sm:$0xf]
    %v272 = vld [vmem:[#allocation9 + $0x8] sm:$0xf]
    %v273 = vld [vmem:[#allocation9 + $0xc] sm:$0xf]
    %v274 = vld [vmem:[#allocation9 + $0x10] sm:$0xf]
    %v275 = vld [vmem:[#allocation9 + $0x14] sm:$0xf]
    %v276 = vld [vmem:[#allocation9 + $0x18] sm:$0xf]
    %v277 = vld [vmem:[#allocation9 + $0x1c] sm:$0xf]
    %v278 = vld [vmem:[#allocation9 + $0x20] sm:$0xf]
    %v279 = vld [vmem:[#allocation9 + $0x24] sm:$0xf]
    %v280 = vld [vmem:[#allocation9 + $0x28] sm:$0xf]
    %v281 = vld [vmem:[#allocation9 + $0x2c] sm:$0xf]
    %v282 = vld [vmem:[#allocation9 + $0x30] sm:$0xf]
    %v283 = vld [vmem:[#allocation9 + $0x34] sm:$0xf]
    %v284 = vld [vmem:[#allocation9 + $0x38] sm:$0xf]
    %v285 = vld [vmem:[#allocation9 + $0x3c] sm:$0xf]
    %v302 = vunpack.c.l.b16 %v270
    %v303 = vunpack.c.l.b16 %v271
    %v304 = vunpack.c.l.b16 %v272
    %v305 = vunpack.c.l.b16 %v273
    %v306 = vunpack.c.l.b16 %v274
    %v307 = vunpack.c.l.b16 %v275
    %v308 = vunpack.c.l.b16 %v276
    %v309 = vunpack.c.l.b16 %v277
    %v310 = vunpack.c.l.b16 %v278
    %v311 = vunpack.c.l.b16 %v279
    %v312 = vunpack.c.l.b16 %v280
    %v313 = vunpack.c.l.b16 %v281
    %v314 = vunpack.c.l.b16 %v282
    %v315 = vunpack.c.l.b16 %v283
    %v316 = vunpack.c.l.b16 %v284
    %v317 = vunpack.c.l.b16 %v285
    %v318 = vpack.c.b16 %v303, %v302
    %v319 = vpack.c.b16 %v305, %v304
    %v320 = vpack.c.b16 %v307, %v306
    %v321 = vpack.c.b16 %v309, %v308
    %v322 = vpack.c.b16 %v311, %v310
    %v323 = vpack.c.b16 %v313, %v312
    %v324 = vpack.c.b16 %v315, %v314
    %v325 = vpack.c.b16 %v317, %v316
    %334 = vmatprep.subr.bf16.mxu0 0
    %335 = vmatpush1.bf16.msra.mxu0 %v318
    %336 = vmatprep.subr.bf16.mxu0 0
    %337 = vmatpush1.bf16.msra.mxu0 %v319
    %338 = vmatprep.subr.bf16.mxu0 0
    %339 = vmatpush1.bf16.msra.mxu0 %v320
    %340 = vmatprep.subr.bf16.mxu0 0
    %341 = vmatpush1.bf16.msra.mxu0 %v321
    %342 = vmatprep.subr.bf16.mxu0 0
    %343 = vmatpush1.bf16.msra.mxu0 %v322
    %344 = vmatprep.subr.bf16.mxu0 0
    %345 = vmatpush1.bf16.msra.mxu0 %v323
    %346 = vmatprep.subr.bf16.mxu0 0
    %347 = vmatpush1.bf16.msra.mxu0 %v324
    %348 = vmatprep.subr.bf16.mxu0 0
    %349 = vmatpush1.bf16.msra.mxu0 %v325
    %350 = vmatprep.subr.bf16.mxu0 0
    %351 = vmatpush1.bf16.msra.mxu0 0
    %352 = vmatprep.subr.bf16.mxu0 0
    %353 = vmatpush1.bf16.msra.mxu0 0
    %354 = vmatprep.subr.bf16.mxu0 0
    %355 = vmatpush1.bf16.msra.mxu0 0
    %356 = vmatprep.subr.bf16.mxu0 0
    %357 = vmatpush1.bf16.msra.mxu0 0
    %358 = vmatprep.subr.bf16.mxu0 0
    %359 = vmatpush1.bf16.msra.mxu0 0
    %360 = vmatprep.subr.bf16.mxu0 0
    %361 = vmatpush1.bf16.msra.mxu0 0
    %362 = vmatprep.subr.bf16.mxu0 0
    %363 = vmatpush1.bf16.msra.mxu0 0
    %364 = vmatprep.subr.bf16.mxu0 0
    %365 = vmatpush1.bf16.msra.mxu0 0
    %366 = vmatprep.mubr.bf16.mxu0 0
    %367 = vmatmul.mubr.bf16.gmra.mrb[0].mxu0 %v242
    %v368 = vpop.f32.mrb[0].mxu0
    %v369 = vadd.f32 0.0, %v368
    %v370 = vpop.f32.mrb[0].mxu0
    %v371 = vpop.f32.mrb[0].mxu0
    %v372 = vadd.f32 0.0, %v371
    %v373 = vpop.f32.mrb[0].mxu0
    %374 = vdwg.mxu0
    %v375 = vld [vmem:[#allocation11] sm:$0xf]
    %v376 = vld [vmem:[#allocation11 + $0x4] sm:$0xf]
    %v377 = vld [vmem:[#allocation11 + $0x8] sm:$0xf]
    %v378 = vld [vmem:[#allocation11 + $0xc] sm:$0xf]
    %v379 = vld [vmem:[#allocation11 + $0x10] sm:$0xf]
    %v380 = vld [vmem:[#allocation11 + $0x14] sm:$0xf]
    %v381 = vld [vmem:[#allocation11 + $0x18] sm:$0xf]
    %v382 = vld [vmem:[#allocation11 + $0x1c] sm:$0xf]
    %v383 = vld [vmem:[#allocation11 + $0x20] sm:$0xf]
    %v384 = vld [vmem:[#allocation11 + $0x24] sm:$0xf]
    %v385 = vld [vmem:[#allocation11 + $0x28] sm:$0xf]
    %v386 = vld [vmem:[#allocation11 + $0x2c] sm:$0xf]
    %v387 = vld [vmem:[#allocation11 + $0x30] sm:$0xf]
    %v388 = vld [vmem:[#allocation11 + $0x34] sm:$0xf]
    %v389 = vld [vmem:[#allocation11 + $0x38] sm:$0xf]
    %v390 = vld [vmem:[#allocation11 + $0x3c] sm:$0xf]
    %v407 = vunpack.c.l.b16 %v375
    %v408 = vunpack.c.l.b16 %v376
    %v409 = vunpack.c.l.b16 %v377
    %v410 = vunpack.c.l.b16 %v378
    %v411 = vunpack.c.l.b16 %v379
    %v412 = vunpack.c.l.b16 %v380
    %v413 = vunpack.c.l.b16 %v381
    %v414 = vunpack.c.l.b16 %v382
    %v415 = vunpack.c.l.b16 %v383
    %v416 = vunpack.c.l.b16 %v384
    %v417 = vunpack.c.l.b16 %v385
    %v418 = vunpack.c.l.b16 %v386
    %v419 = vunpack.c.l.b16 %v387
    %v420 = vunpack.c.l.b16 %v388
    %v421 = vunpack.c.l.b16 %v389
    %v422 = vunpack.c.l.b16 %v390
    %v423 = vpack.c.b16 %v408, %v407
    %v424 = vpack.c.b16 %v410, %v409
    %v425 = vpack.c.b16 %v412, %v411
    %v426 = vpack.c.b16 %v414, %v413
    %v427 = vpack.c.b16 %v416, %v415
    %v428 = vpack.c.b16 %v418, %v417
    %v429 = vpack.c.b16 %v420, %v419
    %v430 = vpack.c.b16 %v422, %v421
    %439 = vmatprep.subr.bf16.mxu0 0
    %440 = vmatpush1.bf16.msra.mxu0 %v423
    %441 = vmatprep.subr.bf16.mxu0 0
    %442 = vmatpush1.bf16.msra.mxu0 %v424
    %443 = vmatprep.subr.bf16.mxu0 0
    %444 = vmatpush1.bf16.msra.mxu0 %v425
    %445 = vmatprep.subr.bf16.mxu0 0
    %446 = vmatpush1.bf16.msra.mxu0 %v426
    %447 = vmatprep.subr.bf16.mxu0 0
    %448 = vmatpush1.bf16.msra.mxu0 %v427
    %449 = vmatprep.subr.bf16.mxu0 0
    %450 = vmatpush1.bf16.msra.mxu0 %v428
    %451 = vmatprep.subr.bf16.mxu0 0
    %452 = vmatpush1.bf16.msra.mxu0 %v429
    %453 = vmatprep.subr.bf16.mxu0 0
    %454 = vmatpush1.bf16.msra.mxu0 %v430
    %455 = vmatprep.subr.bf16.mxu0 0
    %456 = vmatpush1.bf16.msra.mxu0 0
    %457 = vmatprep.subr.bf16.mxu0 0
    %458 = vmatpush1.bf16.msra.mxu0 0
    %459 = vmatprep.subr.bf16.mxu0 0
    %460 = vmatpush1.bf16.msra.mxu0 0
    %461 = vmatprep.subr.bf16.mxu0 0
    %462 = vmatpush1.bf16.msra.mxu0 0
    %463 = vmatprep.subr.bf16.mxu0 0
    %464 = vmatpush1.bf16.msra.mxu0 0
    %465 = vmatprep.subr.bf16.mxu0 0
    %466 = vmatpush1.bf16.msra.mxu0 0
    %467 = vmatprep.subr.bf16.mxu0 0
    %468 = vmatpush1.bf16.msra.mxu0 0
    %469 = vmatprep.subr.bf16.mxu0 0
    %470 = vmatpush1.bf16.msra.mxu0 0
    %471 = vmatprep.mubr.bf16.mxu0 0
    %472 = vmatmul.mubr.bf16.gmra.mrb[0].mxu0 %v242
    %v473 = vpop.f32.mrb[0].mxu0
    %v474 = vadd.f32 0.0, %v473
    %v475 = vpop.f32.mrb[0].mxu0
    %v476 = vpop.f32.mrb[0].mxu0
    %v477 = vadd.f32 0.0, %v476
    %v478 = vpop.f32.mrb[0].mxu0
    %479 = vdwg.mxu0
    %v480 = vld [vmem:[#allocation12] sm:$0xf]
    %v481 = vld [vmem:[#allocation12 + $0x4] sm:$0xf]
    %v482 = vld [vmem:[#allocation12 + $0x8] sm:$0xf]
    %v483 = vld [vmem:[#allocation12 + $0xc] sm:$0xf]
    %v484 = vld [vmem:[#allocation12 + $0x10] sm:$0xf]
    %v485 = vld [vmem:[#allocation12 + $0x14] sm:$0xf]
    %v486 = vld [vmem:[#allocation12 + $0x18] sm:$0xf]
    %v487 = vld [vmem:[#allocation12 + $0x1c] sm:$0xf]
    %v488 = vld [vmem:[#allocation12 + $0x20] sm:$0xf]
    %v489 = vld [vmem:[#allocation12 + $0x24] sm:$0xf]
    %v490 = vld [vmem:[#allocation12 + $0x28] sm:$0xf]
    %v491 = vld [vmem:[#allocation12 + $0x2c] sm:$0xf]
    %v492 = vld [vmem:[#allocation12 + $0x30] sm:$0xf]
    %v493 = vld [vmem:[#allocation12 + $0x34] sm:$0xf]
    %v494 = vld [vmem:[#allocation12 + $0x38] sm:$0xf]
    %v495 = vld [vmem:[#allocation12 + $0x3c] sm:$0xf]
    %v512 = vunpack.c.l.b16 %v480
    %v513 = vunpack.c.l.b16 %v481
    %v514 = vunpack.c.l.b16 %v482
    %v515 = vunpack.c.l.b16 %v483
    %v516 = vunpack.c.l.b16 %v484
    %v517 = vunpack.c.l.b16 %v485
    %v518 = vunpack.c.l.b16 %v486
    %v519 = vunpack.c.l.b16 %v487
    %v520 = vunpack.c.l.b16 %v488
    %v521 = vunpack.c.l.b16 %v489
    %v522 = vunpack.c.l.b16 %v490
    %v523 = vunpack.c.l.b16 %v491
    %v524 = vunpack.c.l.b16 %v492
    %v525 = vunpack.c.l.b16 %v493
    %v526 = vunpack.c.l.b16 %v494
    %v527 = vunpack.c.l.b16 %v495
    %v528 = vpack.c.b16 %v513, %v512
    %v529 = vpack.c.b16 %v515, %v514
    %v530 = vpack.c.b16 %v517, %v516
    %v531 = vpack.c.b16 %v519, %v518
    %v532 = vpack.c.b16 %v521, %v520
    %v533 = vpack.c.b16 %v523, %v522
    %v534 = vpack.c.b16 %v525, %v524
    %v535 = vpack.c.b16 %v527, %v526
    %544 = vmatprep.subr.bf16.mxu0 0
    %545 = vmatpush1.bf16.msra.mxu0 %v528
    %546 = vmatprep.subr.bf16.mxu0 0
    %547 = vmatpush1.bf16.msra.mxu0 %v529
    %548 = vmatprep.subr.bf16.mxu0 0
    %549 = vmatpush1.bf16.msra.mxu0 %v530
    %550 = vmatprep.subr.bf16.mxu0 0
    %551 = vmatpush1.bf16.msra.mxu0 %v531
    %552 = vmatprep.subr.bf16.mxu0 0
    %553 = vmatpush1.bf16.msra.mxu0 %v532
    %554 = vmatprep.subr.bf16.mxu0 0
    %555 = vmatpush1.bf16.msra.mxu0 %v533
    %556 = vmatprep.subr.bf16.mxu0 0
    %557 = vmatpush1.bf16.msra.mxu0 %v534
    %558 = vmatprep.subr.bf16.mxu0 0
    %559 = vmatpush1.bf16.msra.mxu0 %v535
    %560 = vmatprep.subr.bf16.mxu0 0
    %561 = vmatpush1.bf16.msra.mxu0 0
    %562 = vmatprep.subr.bf16.mxu0 0
    %563 = vmatpush1.bf16.msra.mxu0 0
    %564 = vmatprep.subr.bf16.mxu0 0
    %565 = vmatpush1.bf16.msra.mxu0 0
    %566 = vmatprep.subr.bf16.mxu0 0
    %567 = vmatpush1.bf16.msra.mxu0 0
    %568 = vmatprep.subr.bf16.mxu0 0
    %569 = vmatpush1.bf16.msra.mxu0 0
    %570 = vmatprep.subr.bf16.mxu0 0
    %571 = vmatpush1.bf16.msra.mxu0 0
    %572 = vmatprep.subr.bf16.mxu0 0
    %573 = vmatpush1.bf16.msra.mxu0 0
    %574 = vmatprep.subr.bf16.mxu0 0
    %575 = vmatpush1.bf16.msra.mxu0 0
    %576 = vmatprep.mubr.bf16.mxu0 0
    %577 = vmatmul.mubr.bf16.gmra.mrb[0].mxu0 %v242
    %v578 = vpop.f32.mrb[0].mxu0
    %v579 = vadd.f32 0.0, %v578
    %v580 = vpop.f32.mrb[0].mxu0
    %v581 = vpop.f32.mrb[0].mxu0
    %v582 = vadd.f32 0.0, %v581
    %v583 = vpop.f32.mrb[0].mxu0
    %584 = vdwg.mxu0
    %v585 = vld [vmem:[#allocation14] sm:$0xf]
    %v586 = vld [vmem:[#allocation14 + $0x4] sm:$0xf]
    %v587 = vld [vmem:[#allocation14 + $0x8] sm:$0xf]
    %v588 = vld [vmem:[#allocation14 + $0xc] sm:$0xf]
    %v589 = vld [vmem:[#allocation14 + $0x10] sm:$0xf]
    %v590 = vld [vmem:[#allocation14 + $0x14] sm:$0xf]
    %v591 = vld [vmem:[#allocation14 + $0x18] sm:$0xf]
    %v592 = vld [vmem:[#allocation14 + $0x1c] sm:$0xf]
    %v593 = vld [vmem:[#allocation14 + $0x20] sm:$0xf]
    %v594 = vld [vmem:[#allocation14 + $0x24] sm:$0xf]
    %v595 = vld [vmem:[#allocation14 + $0x28] sm:$0xf]
    %v596 = vld [vmem:[#allocation14 + $0x2c] sm:$0xf]
    %v597 = vld [vmem:[#allocation14 + $0x30] sm:$0xf]
    %v598 = vld [vmem:[#allocation14 + $0x34] sm:$0xf]
    %v599 = vld [vmem:[#allocation14 + $0x38] sm:$0xf]
    %v600 = vld [vmem:[#allocation14 + $0x3c] sm:$0xf]
    %v617 = vunpack.c.l.b16 %v585
    %v618 = vunpack.c.l.b16 %v586
    %v619 = vunpack.c.l.b16 %v587
    %v620 = vunpack.c.l.b16 %v588
    %v621 = vunpack.c.l.b16 %v589
    %v622 = vunpack.c.l.b16 %v590
    %v623 = vunpack.c.l.b16 %v591
    %v624 = vunpack.c.l.b16 %v592
    %v625 = vunpack.c.l.b16 %v593
    %v626 = vunpack.c.l.b16 %v594
    %v627 = vunpack.c.l.b16 %v595
    %v628 = vunpack.c.l.b16 %v596
    %v629 = vunpack.c.l.b16 %v597
    %v630 = vunpack.c.l.b16 %v598
    %v631 = vunpack.c.l.b16 %v599
    %v632 = vunpack.c.l.b16 %v600
    %v633 = vpack.c.b16 %v618, %v617
    %v634 = vpack.c.b16 %v620, %v619
    %v635 = vpack.c.b16 %v622, %v621
    %v636 = vpack.c.b16 %v624, %v623
    %v637 = vpack.c.b16 %v626, %v625
    %v638 = vpack.c.b16 %v628, %v627
    %v639 = vpack.c.b16 %v630, %v629
    %v640 = vpack.c.b16 %v632, %v631
    %649 = vmatprep.subr.bf16.mxu0 0
    %650 = vmatpush1.bf16.msra.mxu0 %v633
    %651 = vmatprep.subr.bf16.mxu0 0
    %652 = vmatpush1.bf16.msra.mxu0 %v634
    %653 = vmatprep.subr.bf16.mxu0 0
    %654 = vmatpush1.bf16.msra.mxu0 %v635
    %655 = vmatprep.subr.bf16.mxu0 0
    %656 = vmatpush1.bf16.msra.mxu0 %v636
    %657 = vmatprep.subr.bf16.mxu0 0
    %658 = vmatpush1.bf16.msra.mxu0 %v637
    %659 = vmatprep.subr.bf16.mxu0 0
    %660 = vmatpush1.bf16.msra.mxu0 %v638
    %661 = vmatprep.subr.bf16.mxu0 0
    %662 = vmatpush1.bf16.msra.mxu0 %v639
    %663 = vmatprep.subr.bf16.mxu0 0
    %664 = vmatpush1.bf16.msra.mxu0 %v640
    %665 = vmatprep.subr.bf16.mxu0 0
    %666 = vmatpush1.bf16.msra.mxu0 0
    %667 = vmatprep.subr.bf16.mxu0 0
    %668 = vmatpush1.bf16.msra.mxu0 0
    %669 = vmatprep.subr.bf16.mxu0 0
    %670 = vmatpush1.bf16.msra.mxu0 0
    %671 = vmatprep.subr.bf16.mxu0 0
    %672 = vmatpush1.bf16.msra.mxu0 0
    %673 = vmatprep.subr.bf16.mxu0 0
    %674 = vmatpush1.bf16.msra.mxu0 0
    %675 = vmatprep.subr.bf16.mxu0 0
    %676 = vmatpush1.bf16.msra.mxu0 0
    %677 = vmatprep.subr.bf16.mxu0 0
    %678 = vmatpush1.bf16.msra.mxu0 0
    %679 = vmatprep.subr.bf16.mxu0 0
    %680 = vmatpush1.bf16.msra.mxu0 0
    %681 = vmatprep.mubr.bf16.mxu0 0
    %682 = vmatmul.mubr.bf16.gmra.mrb[0].mxu0 %v242
    %v683 = vpop.f32.mrb[0].mxu0
    %v684 = vadd.f32 0.0, %v683
    %v685 = vpop.f32.mrb[0].mxu0
    %v686 = vpop.f32.mrb[0].mxu0
    %v687 = vadd.f32 0.0, %v686
    %v688 = vpop.f32.mrb[0].mxu0
    %689 = vdwg.mxu0
    %v690 = vld [vmem:[#allocation15] sm:$0xff]
    %v691 = vld [vmem:[#allocation15 + $0x8] sm:$0xff]
    %v692 = vld [vmem:[#allocation15 + $0x10] sm:$0xff]
    %v693 = vld [vmem:[#allocation15 + $0x18] sm:$0xff]
    %v694 = vld [vmem:[#allocation15 + $0x20] sm:$0xff]
    %v695 = vld [vmem:[#allocation15 + $0x28] sm:$0xff]
    %v696 = vld [vmem:[#allocation15 + $0x30] sm:$0xff]
    %v697 = vld [vmem:[#allocation15 + $0x38] sm:$0xff]
    %v698 = vld [vmem:[#allocation15 + $0x40] sm:$0xff]
    %v699 = vld [vmem:[#allocation15 + $0x48] sm:$0xff]
    %v700 = vld [vmem:[#allocation15 + $0x50] sm:$0xff]
    %v701 = vld [vmem:[#allocation15 + $0x58] sm:$0xff]
    %v702 = vld [vmem:[#allocation15 + $0x60] sm:$0xff]
    %v703 = vld [vmem:[#allocation15 + $0x68] sm:$0xff]
    %v704 = vld [vmem:[#allocation15 + $0x70] sm:$0xff]
    %v705 = vld [vmem:[#allocation15 + $0x78] sm:$0xff]
    %v706 = vld [vmem:[#allocation17] sm:$0xf]
    %v707 = vlaneseq
    %v708 = vshrl.u32 %v707, 7
    %v709 = vsub.s32 3, %v708
    %v710 = vrot.slane %v706, %v709
    %v711 = vmul.f32 %v474, %v710
    %v712 = vmul.f32 %v477, %v710
    %v713 = vrot.slane %v474, 5
    %v714 = vrot.slane %v477, 5
    %vm715 = vcmp.lt.s32.totalorder %v244, 3
    %v716 = vsel %vm715, %v713, %v714
    %v717 = vsel %vm715, %v714, %v713
    %vm718 = vcmp.ge.s32.totalorder %v268, 3
    %vm719 = vcmp.ge.s32.totalorder %v269, 3
    %v720 = vsel %vm718, 1, 0
    %v721 = vsel %vm719, 1, 0
    %vm722 = vcmp.eq.s32.totalorder %v720, 1
    %vm723 = vcmp.eq.s32.totalorder %v721, 1
    %v724 = vsel %vm722, %v717, 0.0
    %v725 = vsel %vm723, %v716, 0.0
    %v726 = vlaneseq
    %v727 = vshrl.u32 %v726, 7
    %v728 = vsub.s32 0, %v727
    %v729 = vrot.slane %v706, %v728
    %v730 = vmul.f32 %v724, %v729
    %v731 = vmul.f32 %v725, %v729
    %v732 = vadd.f32 %v711, %v730
    %v733 = vadd.f32 %v712, %v731
    %v734 = vrot.slane %v474, 6
    %v735 = vrot.slane %v477, 6
    %vm736 = vcmp.lt.s32.totalorder %v244, 2
    %v737 = vsel %vm736, %v734, %v735
    %v738 = vsel %vm736, %v735, %v734
    %vm739 = vcmp.ge.s32.totalorder %v268, 2
    %vm740 = vcmp.ge.s32.totalorder %v269, 2
    %v741 = vsel %vm739, 1, 0
    %v742 = vsel %vm740, 1, 0
    %vm743 = vcmp.eq.s32.totalorder %v741, 1
    %vm744 = vcmp.eq.s32.totalorder %v742, 1
    %v745 = vsel %vm743, %v738, 0.0
    %v746 = vsel %vm744, %v737, 0.0
    %v747 = vlaneseq
    %v748 = vshrl.u32 %v747, 7
    %v749 = vsub.s32 1, %v748
    %v750 = vrot.slane %v706, %v749
    %v751 = vmul.f32 %v745, %v750
    %v752 = vmul.f32 %v746, %v750
    %v753 = vadd.f32 %v732, %v751
    %v754 = vadd.f32 %v733, %v752
    %v755 = vrot.slane %v474, 7
    %v756 = vrot.slane %v477, 7
    %vm757 = vcmp.lt.s32.totalorder %v244, 1
    %v758 = vsel %vm757, %v755, %v756
    %v759 = vsel %vm757, %v756, %v755
    %vm760 = vcmp.ge.s32.totalorder %v268, 1
    %vm761 = vcmp.ge.s32.totalorder %v269, 1
    %v762 = vsel %vm760, 1, 0
    %v763 = vsel %vm761, 1, 0
    %vm764 = vcmp.eq.s32.totalorder %v762, 1
    %vm765 = vcmp.eq.s32.totalorder %v763, 1
    %v766 = vsel %vm764, %v759, 0.0
    %v767 = vsel %vm765, %v758, 0.0
    %v768 = vlaneseq
    %v769 = vshrl.u32 %v768, 7
    %v770 = vsub.s32 2, %v769
    %v771 = vrot.slane %v706, %v770
    %v772 = vmul.f32 %v766, %v771
    %v773 = vmul.f32 %v767, %v771
    %v774 = vadd.f32 %v753, %v772
    %v775 = vadd.f32 %v754, %v773
    %v776 = vld [vmem:[#allocation21] sm:$0x1]
    %v778 = vlaneseq
    %v779 = vshrl.u32 %v778, 7
    %v780 = vsub.s32 0, %v779
    %v781 = vrot.slane %v776, %v780
    %v783 = vadd.f32 %v774, %v781
    %v784 = vadd.f32 %v775, %v781
    %v785 = vmul.f32 %v783, 0.5
    %v786 = vmul.f32 %v784, 0.5
    %v787 = vtanh.pop %v785
    %v788 = vtanh.pop %v786
    %v789 = vmul.f32 %v787, 0.5
    %v790 = vmul.f32 %v788, 0.5
    %v791 = vadd.f32 %v789, 0.5
    %v792 = vadd.f32 %v790, 0.5
    %v793 = vmul.f32 %v783, %v791
    %v794 = vmul.f32 %v784, %v792
    %v795 = vld [vmem:[#allocation18] sm:$0xf]
    %v796 = vlaneseq
    %v797 = vshrl.u32 %v796, 7
    %v798 = vsub.s32 3, %v797
    %v799 = vrot.slane %v795, %v798
    %v800 = vmul.f32 %v579, %v799
    %v801 = vmul.f32 %v582, %v799
    %v802 = vrot.slane %v579, 5
    %v803 = vrot.slane %v582, 5
    %v804 = vsel %vm715, %v802, %v803
    %v805 = vsel %vm715, %v803, %v802
    %v806 = vsel %vm722, %v805, 0.0
    %v807 = vsel %vm723, %v804, 0.0
    %v808 = vlaneseq
    %v809 = vshrl.u32 %v808, 7
    %v810 = vsub.s32 0, %v809
    %v811 = vrot.slane %v795, %v810
    %v812 = vmul.f32 %v806, %v811
    %v813 = vmul.f32 %v807, %v811
    %v814 = vadd.f32 %v800, %v812
    %v815 = vadd.f32 %v801, %v813
    %v816 = vrot.slane %v579, 6
    %v817 = vrot.slane %v582, 6
    %v818 = vsel %vm736, %v816, %v817
    %v819 = vsel %vm736, %v817, %v816
    %v820 = vsel %vm743, %v819, 0.0
    %v821 = vsel %vm744, %v818, 0.0
    %v822 = vlaneseq
    %v823 = vshrl.u32 %v822, 7
    %v824 = vsub.s32 1, %v823
    %v825 = vrot.slane %v795, %v824
    %v826 = vmul.f32 %v820, %v825
    %v827 = vmul.f32 %v821, %v825
    %v828 = vadd.f32 %v814, %v826
    %v829 = vadd.f32 %v815, %v827
    %v830 = vrot.slane %v579, 7
    %v831 = vrot.slane %v582, 7
    %v832 = vsel %vm757, %v830, %v831
    %v833 = vsel %vm757, %v831, %v830
    %v834 = vsel %vm764, %v833, 0.0
    %v835 = vsel %vm765, %v832, 0.0
    %v836 = vlaneseq
    %v837 = vshrl.u32 %v836, 7
    %v838 = vsub.s32 2, %v837
    %v839 = vrot.slane %v795, %v838
    %v840 = vmul.f32 %v834, %v839
    %v841 = vmul.f32 %v835, %v839
    %v842 = vadd.f32 %v828, %v840
    %v843 = vadd.f32 %v829, %v841
    %v844 = vld [vmem:[#allocation23] sm:$0x1]
    %v846 = vlaneseq
    %v847 = vshrl.u32 %v846, 7
    %v848 = vsub.s32 0, %v847
    %v849 = vrot.slane %v844, %v848
    %v851 = vadd.f32 %v842, %v849
    %v852 = vadd.f32 %v843, %v849
    %v853 = vmul.f32 %v851, 0.5
    %v854 = vmul.f32 %v852, 0.5
    %v855 = vtanh.pop %v853
    %v856 = vtanh.pop %v854
    %v857 = vmul.f32 %v855, 0.5
    %v858 = vmul.f32 %v856, 0.5
    %v859 = vadd.f32 %v857, 0.5
    %v860 = vadd.f32 %v858, 0.5
    %v861 = vmul.f32 %v851, %v859
    %v862 = vmul.f32 %v852, %v860
    %v863 = vld [vmem:[#allocation20] sm:$0xf]
    %v864 = vlaneseq
    %v865 = vshrl.u32 %v864, 7
    %v866 = vsub.s32 3, %v865
    %v867 = vrot.slane %v863, %v866
    %v868 = vmul.f32 %v684, %v867
    %v869 = vmul.f32 %v687, %v867
    %v870 = vrot.slane %v684, 5
    %v871 = vrot.slane %v687, 5
    %v872 = vsel %vm715, %v870, %v871
    %v873 = vsel %vm715, %v871, %v870
    %v874 = vsel %vm722, %v873, 0.0
    %v875 = vsel %vm723, %v872, 0.0
    %v876 = vlaneseq
    %v877 = vshrl.u32 %v876, 7
    %v878 = vsub.s32 0, %v877
    %v879 = vrot.slane %v863, %v878
    %v880 = vmul.f32 %v874, %v879
    %v881 = vmul.f32 %v875, %v879
    %v882 = vadd.f32 %v868, %v880
    %v883 = vadd.f32 %v869, %v881
    %v884 = vrot.slane %v684, 6
    %v885 = vrot.slane %v687, 6
    %v886 = vsel %vm736, %v884, %v885
    %v887 = vsel %vm736, %v885, %v884
    %v888 = vsel %vm743, %v887, 0.0
    %v889 = vsel %vm744, %v886, 0.0
    %v890 = vlaneseq
    %v891 = vshrl.u32 %v890, 7
    %v892 = vsub.s32 1, %v891
    %v893 = vrot.slane %v863, %v892
    %v894 = vmul.f32 %v888, %v893
    %v895 = vmul.f32 %v889, %v893
    %v896 = vadd.f32 %v882, %v894
    %v897 = vadd.f32 %v883, %v895
    %v898 = vrot.slane %v684, 7
    %v899 = vrot.slane %v687, 7
    %v900 = vsel %vm757, %v898, %v899
    %v901 = vsel %vm757, %v899, %v898
    %v902 = vsel %vm764, %v901, 0.0
    %v903 = vsel %vm765, %v900, 0.0
    %v904 = vlaneseq
    %v905 = vshrl.u32 %v904, 7
    %v906 = vsub.s32 2, %v905
    %v907 = vrot.slane %v863, %v906
    %v908 = vmul.f32 %v902, %v907
    %v909 = vmul.f32 %v903, %v907
    %v910 = vadd.f32 %v896, %v908
    %v911 = vadd.f32 %v897, %v909
    %v912 = vld [vmem:[#allocation24] sm:$0x1]
    %v914 = vlaneseq
    %v915 = vshrl.u32 %v914, 7
    %v916 = vsub.s32 0, %v915
    %v917 = vrot.slane %v912, %v916
    %v919 = vadd.f32 %v910, %v917
    %v920 = vadd.f32 %v911, %v917
    %v921 = vmul.f32 %v919, 0.5
    %v922 = vmul.f32 %v920, 0.5
    %v923 = vtanh.pop %v921
    %v924 = vtanh.pop %v922
    %v925 = vmul.f32 %v923, 0.5
    %v926 = vmul.f32 %v924, 0.5
    %v927 = vadd.f32 %v925, 0.5
    %v928 = vadd.f32 %v926, 0.5
    %v929 = vmul.f32 %v919, %v927
    %v930 = vmul.f32 %v920, %v928
    %v931 = vld [vmem:[#allocation4] sm:$0x1]
    %v933 = vlaneseq
    %v934 = vshrl.u32 %v933, 7
    %v935 = vsub.s32 0, %v934
    %v936 = vrot.slane %v931, %v935
    %938 = vmatprep.subr.mxu0 0.0
    %939 = vmatpush1.msra.mxu0 %v690
    %940 = vmatprep.subr.mxu0 0.0
    %941 = vmatpush1.msra.mxu0 %v691
    %942 = vmatprep.subr.mxu0 0.0
    %943 = vmatpush1.msra.mxu0 %v692
    %944 = vmatprep.subr.mxu0 0.0
    %945 = vmatpush1.msra.mxu0 %v693
    %946 = vmatprep.subr.mxu0 0.0
    %947 = vmatpush1.msra.mxu0 %v694
    %948 = vmatprep.subr.mxu0 0.0
    %949 = vmatpush1.msra.mxu0 %v695
    %950 = vmatprep.subr.mxu0 0.0
    %951 = vmatpush1.msra.mxu0 %v696
    %952 = vmatprep.subr.mxu0 0.0
    %953 = vmatpush1.msra.mxu0 %v697
    %954 = vmatprep.subr.mxu0 0.0
    %955 = vmatpush1.msra.mxu0 %v698
    %956 = vmatprep.subr.mxu0 0.0
    %957 = vmatpush1.msra.mxu0 %v699
    %958 = vmatprep.subr.mxu0 0.0
    %959 = vmatpush1.msra.mxu0 %v700
    %960 = vmatprep.subr.mxu0 0.0
    %961 = vmatpush1.msra.mxu0 %v701
    %962 = vmatprep.subr.mxu0 0.0
    %963 = vmatpush1.msra.mxu0 %v702
    %964 = vmatprep.subr.mxu0 0.0
    %965 = vmatpush1.msra.mxu0 %v703
    %966 = vmatprep.subr.mxu0 0.0
    %967 = vmatpush1.msra.mxu0 %v704
    %968 = vmatprep.subr.mxu0 0.0
    %969 = vmatpush1.msra.mxu0 %v705
    %970 = vmatprep.subr.mxu0 0.0
    %971 = vmatpush1.msra.mxu0 0.0
    %972 = vmatprep.subr.mxu0 0.0
    %973 = vmatpush1.msra.mxu0 0.0
    %974 = vmatprep.subr.mxu0 0.0
    %975 = vmatpush1.msra.mxu0 0.0
    %976 = vmatprep.subr.mxu0 0.0
    %977 = vmatpush1.msra.mxu0 0.0
    %978 = vmatprep.subr.mxu0 0.0
    %979 = vmatpush1.msra.mxu0 0.0
    %980 = vmatprep.subr.mxu0 0.0
    %981 = vmatpush1.msra.mxu0 0.0
    %982 = vmatprep.subr.mxu0 0.0
    %983 = vmatpush1.msra.mxu0 0.0
    %984 = vmatprep.subr.mxu0 0.0
    %985 = vmatpush1.msra.mxu0 0.0
    %986 = vmatprep.subr.mxu0 0.0
    %987 = vmatpush1.msra.mxu0 0.0
    %988 = vmatprep.subr.mxu0 0.0
    %989 = vmatpush1.msra.mxu0 0.0
    %990 = vmatprep.subr.mxu0 0.0
    %991 = vmatpush1.msra.mxu0 0.0
    %992 = vmatprep.subr.mxu0 0.0
    %993 = vmatpush1.msra.mxu0 0.0
    %994 = vmatprep.subr.mxu0 0.0
    %995 = vmatpush1.msra.mxu0 0.0
    %996 = vmatprep.subr.mxu0 0.0
    %997 = vmatpush1.msra.mxu0 0.0
    %998 = vmatprep.subr.mxu0 0.0
    %999 = vmatpush1.msra.mxu0 0.0
    %1000 = vmatprep.subr.mxu0 0.0
    %1001 = vmatpush1.msra.mxu0 0.0
    %1002 = vmatprep.mubr.f32.mxu0 0.0
    %1003 = vmatmul.mubr.f32.gmra.mrb[0].mxu0 %v240
    %v1004 = vpop.f32.mrb[0].mxu0
    %v1005 = vadd.f32 %v936, %v1004
    %v1006 = vpop.f32.mrb[0].mxu0
    %1007 = vmatprep.mubr.f32.mxu0 0.0
    %1008 = vmatmul.mubr.f32.gmra.mrb[0].mxu0 %v241
    %v1009 = vpop.f32.mrb[0].mxu0
    %v1010 = vadd.f32 %v936, %v1009
    %v1011 = vpop.f32.mrb[0].mxu0
    %1012 = vdwg.mxu0
    %v1013 = vmin.f32 %v1005, 20.0
    %v1014 = vmin.f32 %v1010, 20.0
    %vm1015 = vcmp.gt.f32.partialorder %v1005, 20.0
    %vm1016 = vcmp.gt.f32.partialorder %v1010, 20.0
    %v1017 = vmul.f32 %v1013, 1.442695
    %v1018 = vpow.pop %v1017
    %v1019 = vmul.f32 %v1014, 1.442695
    %v1020 = vpow.pop %v1019
    %v1021 = vadd.f32 %v1018, 1.0
    %v1022 = vadd.f32 %v1020, 1.0
    %v1023 = vlog2.pop %v1021
    %v1024 = vmul.f32 %v1023, 0.6931472
    %v1025 = vlog2.pop %v1022
    %v1026 = vmul.f32 %v1025, 0.6931472
    %v1027 = vsel %vm1015, %v1005, %v1024
    %v1028 = vsel %vm1016, %v1010, %v1026
    %v1029 = vld [vmem:[#allocation3] sm:$0x1]
    %v1030 = vmul.f32 %v1029, 1.442695
    %v1031 = vpow.pop %v1030
    %v1032 = vsub.f32 0.0, %v1031
    %v1033 = vrot.slane %v1027, 7
    %v1034 = vrot.slane %v1028, 7
    %v1035 = vsel %vm757, %v1033, %v1034
    %v1036 = vsel %vm757, %v1034, %v1033
    %v1037 = vsel %vm760, %v1036, 0.0
    %v1038 = vsel %vm761, %v1035, 0.0
    %v1039 = vadd.f32 %v1027, %v1037
    %v1040 = vadd.f32 %v1028, %v1038
    %v1041 = vrot.slane %v1039, 6
    %v1042 = vrot.slane %v1040, 6
    %v1043 = vsel %vm736, %v1041, %v1042
    %v1044 = vsel %vm736, %v1042, %v1041
    %v1045 = vsel %vm739, %v1044, 0.0
    %v1046 = vsel %vm740, %v1043, 0.0
    %v1047 = vadd.f32 %v1039, %v1045
    %v1048 = vadd.f32 %v1040, %v1046
    %v1049 = vrot.slane %v1047, 4
    %v1050 = vrot.slane %v1048, 4
    %vm1051 = vcmp.lt.s32.totalorder %v244, 4
    %v1052 = vsel %vm1051, %v1049, %v1050
    %v1053 = vsel %vm1051, %v1050, %v1049
    %vm1054 = vcmp.ge.s32.totalorder %v268, 4
    %vm1055 = vcmp.ge.s32.totalorder %v269, 4
    %v1056 = vsel %vm1054, %v1053, 0.0
    %v1057 = vsel %vm1055, %v1052, 0.0
    %v1058 = vadd.f32 %v1047, %v1056
    %v1059 = vadd.f32 %v1048, %v1057
    %v1061 = vlaneseq
    %v1062 = vshrl.u32 %v1061, 7
    %v1063 = vsub.s32 0, %v1062
    %v1064 = vrot.slane %v1032, %v1063
    %v1066 = vmul.f32 %v1064, %v1058
    %v1067 = vmul.f32 %v1064, %v1059
    %v1068 = vmul.f32 %v1066, 1.442695
    %v1069 = vpow.pop %v1068
    %v1070 = vmul.f32 %v1067, 1.442695
    %v1071 = vpow.pop %v1070
    %v1072 = vsub.f32 0.0, %v1032
    %v1074 = vlaneseq
    %v1075 = vshrl.u32 %v1074, 7
    %v1076 = vsub.s32 0, %v1075
    %v1077 = vrot.slane %v1072, %v1076
    %v1079 = vmul.f32 %v1077, %v1058
    %v1080 = vmul.f32 %v1077, %v1059
    %v1081 = vmul.f32 %v1079, 1.442695
    %v1082 = vpow.pop %v1081
    %v1083 = vmul.f32 %v1080, 1.442695
    %v1084 = vpow.pop %v1083
    %v1085 = vmul.f32 %v1082, %v1027
    %v1086 = vmul.f32 %v1084, %v1028
    %v1087 = vpack.c.bf16 %v929, %v929
    %v1088 = vpack.c.bf16 %v930, %v930
    %v1089 = vpack.c.bf16 %v861, %v861
    %v1090 = vpack.c.bf16 %v862, %v862
    %vm1091 = vcmask 523264
    %v1093 = vsel %vm1091, %v1087, 0
    %v1096 = vsel %vm1091, %v1089, 0
    %1098 = vmatprep.subr.bf16.mxu0 0
    %1099 = vmatpush1.bf16.xpose.msra.mxu0 %v1096
    %1100 = vmatprep.subr.bf16.mxu0 0
    %1101 = vmatpush1.bf16.xpose.msra.mxu0 0
    %1102 = vmatprep.subr.bf16.mxu0 0
    %1103 = vmatpush1.bf16.xpose.msra.mxu0 0
    %1104 = vmatprep.subr.bf16.mxu0 0
    %1105 = vmatpush1.bf16.xpose.msra.mxu0 0
    %1106 = vmatprep.subr.bf16.mxu0 0
    %1107 = vmatpush1.bf16.xpose.msra.mxu0 0
    %1108 = vmatprep.subr.bf16.mxu0 0
    %1109 = vmatpush1.bf16.xpose.msra.mxu0 0
    %1110 = vmatprep.subr.bf16.mxu0 0
    %1111 = vmatpush1.bf16.xpose.msra.mxu0 0
    %1112 = vmatprep.subr.bf16.mxu0 0
    %1113 = vmatpush1.bf16.xpose.msra.mxu0 0
    %1114 = vmatprep.subr.bf16.mxu0 0
    %1115 = vmatpush1.bf16.xpose.msra.mxu0 0
    %1116 = vmatprep.subr.bf16.mxu0 0
    %1117 = vmatpush1.bf16.xpose.msra.mxu0 0
    %1118 = vmatprep.subr.bf16.mxu0 0
    %1119 = vmatpush1.bf16.xpose.msra.mxu0 0
    %1120 = vmatprep.subr.bf16.mxu0 0
    %1121 = vmatpush1.bf16.xpose.msra.mxu0 0
    %1122 = vmatprep.subr.bf16.mxu0 0
    %1123 = vmatpush1.bf16.xpose.msra.mxu0 0
    %1124 = vmatprep.subr.bf16.mxu0 0
    %1125 = vmatpush1.bf16.xpose.msra.mxu0 0
    %1126 = vmatprep.subr.bf16.mxu0 0
    %1127 = vmatpush1.bf16.xpose.msra.mxu0 0
    %1128 = vmatprep.subr.bf16.mxu0 0
    %1129 = vmatpush1.bf16.xpose.msra.mxu0 0
    %1130 = vmatprep.mubr.bf16.mxu0 0
    %1131 = vmatmul.mubr.bf16.gmra.mrb[0].mxu0 %v1093
    %v1132 = vpop.f32.mrb[0].mxu0
    %v1133 = vadd.f32 0.0, %v1132
    %v1134 = vpop.f32.mrb[0].mxu0
    %v1135 = vpop.f32.mrb[0].mxu0
    %v1136 = vpop.f32.mrb[0].mxu0
    %1137 = vdwg.mxu0
    %v1139 = vsel %vm1091, %v1088, 0
    %v1142 = vsel %vm1091, %v1090, 0
    %1144 = vmatprep.subr.bf16.mxu0 0
    %1145 = vmatpush1.bf16.xpose.msra.mxu0 %v1142
    %1146 = vmatprep.subr.bf16.mxu0 0
    %1147 = vmatpush1.bf16.xpose.msra.mxu0 0
    %1148 = vmatprep.subr.bf16.mxu0 0
    %1149 = vmatpush1.bf16.xpose.msra.mxu0 0
    %1150 = vmatprep.subr.bf16.mxu0 0
    %1151 = vmatpush1.bf16.xpose.msra.mxu0 0
    %1152 = vmatprep.subr.bf16.mxu0 0
    %1153 = vmatpush1.bf16.xpose.msra.mxu0 0
    %1154 = vmatprep.subr.bf16.mxu0 0
    %1155 = vmatpush1.bf16.xpose.msra.mxu0 0
    %1156 = vmatprep.subr.bf16.mxu0 0
    %1157 = vmatpush1.bf16.xpose.msra.mxu0 0
    %1158 = vmatprep.subr.bf16.mxu0 0
    %1159 = vmatpush1.bf16.xpose.msra.mxu0 0
    %1160 = vmatprep.subr.bf16.mxu0 0
    %1161 = vmatpush1.bf16.xpose.msra.mxu0 0
    %1162 = vmatprep.subr.bf16.mxu0 0
    %1163 = vmatpush1.bf16.xpose.msra.mxu0 0
    %1164 = vmatprep.subr.bf16.mxu0 0
    %1165 = vmatpush1.bf16.xpose.msra.mxu0 0
    %1166 = vmatprep.subr.bf16.mxu0 0
    %1167 = vmatpush1.bf16.xpose.msra.mxu0 0
    %1168 = vmatprep.subr.bf16.mxu0 0
    %1169 = vmatpush1.bf16.xpose.msra.mxu0 0
    %1170 = vmatprep.subr.bf16.mxu0 0
    %1171 = vmatpush1.bf16.xpose.msra.mxu0 0
    %1172 = vmatprep.subr.bf16.mxu0 0
    %1173 = vmatpush1.bf16.xpose.msra.mxu0 0
    %1174 = vmatprep.subr.bf16.mxu0 0
    %1175 = vmatpush1.bf16.xpose.msra.mxu0 0
    %1176 = vmatprep.mubr.bf16.mxu0 0
    %1177 = vmatmul.mubr.bf16.gmra.mrb[0].mxu0 %v1139
    %v1178 = vpop.f32.mrb[0].mxu0
    %v1179 = vadd.f32 0.0, %v1178
    %v1180 = vpop.f32.mrb[0].mxu0
    %v1181 = vpop.f32.mrb[0].mxu0
    %v1182 = vpop.f32.mrb[0].mxu0
    %1183 = vdwg.mxu0
    %v1184 = vlaneseq
    %v1185 = vand.u32 %v1184, 127
    %vm1186 = vcmp.ge.s32.totalorder %v244, %v1185
    %v1187 = vsel %vm1186, 1, 0
    %vm1188 = vcmp.eq.s32.totalorder %v1187, 1
    %v1189 = vsel %vm1188, %v1133, 0.0
    %v1190 = vsel %vm1188, %v1179, 0.0
    %v1191 = vpack.c.bf16 %v1189, %v1189
    %v1192 = vpack.c.bf16 %v1190, %v1190
    %1194 = vset.pattern.permute.xlu0 0
    %1195 = vperm.xlu0 %1194, %v1085
    %v1196 = vpop.permute.xlu0 %1195
    %1199 = vset.pattern.permute.xlu0 0
    %1200 = vperm.xlu0 %1199, %v1086
    %v1201 = vpop.permute.xlu0 %1200
    %v1203 = vmul.f32 %v793, %v1196
    %v1204 = vmul.f32 %v794, %v1201
    %v1205 = vpack.c.bf16 %v1204, %v1203
    %v1207 = vunpack.c.l.b16 %v1205
    %v1208 = vunpack.c.h.b16 %v1205
    %v1209 = vpack.c.b16 %v1207, %v1207
    %v1210 = vpack.c.b16 %v1208, %v1208
    %vm1211 = vcmask 64512
    %v1213 = vsel %vm1211, %v1191, 0
    %vm1215 = vcmask 1043456
    %v1217 = vsel %vm1215, %v1209, 0
    %1219 = vmatprep.subr.bf16.mxu0 0
    %1220 = vmatpush1.bf16.msra.mxu0 %v1217
    %1221 = vmatprep.subr.bf16.mxu0 0
    %1222 = vmatpush1.bf16.msra.mxu0 0
    %1223 = vmatprep.subr.bf16.mxu0 0
    %1224 = vmatpush1.bf16.msra.mxu0 0
    %1225 = vmatprep.subr.bf16.mxu0 0
    %1226 = vmatpush1.bf16.msra.mxu0 0
    %1227 = vmatprep.subr.bf16.mxu0 0
    %1228 = vmatpush1.bf16.msra.mxu0 0
    %1229 = vmatprep.subr.bf16.mxu0 0
    %1230 = vmatpush1.bf16.msra.mxu0 0
    %1231 = vmatprep.subr.bf16.mxu0 0
    %1232 = vmatpush1.bf16.msra.mxu0 0
    %1233 = vmatprep.subr.bf16.mxu0 0
    %1234 = vmatpush1.bf16.msra.mxu0 0
    %1235 = vmatprep.subr.bf16.mxu0 0
    %1236 = vmatpush1.bf16.msra.mxu0 0
    %1237 = vmatprep.subr.bf16.mxu0 0
    %1238 = vmatpush1.bf16.msra.mxu0 0
    %1239 = vmatprep.subr.bf16.mxu0 0
    %1240 = vmatpush1.bf16.msra.mxu0 0
    %1241 = vmatprep.subr.bf16.mxu0 0
    %1242 = vmatpush1.bf16.msra.mxu0 0
    %1243 = vmatprep.subr.bf16.mxu0 0
    %1244 = vmatpush1.bf16.msra.mxu0 0
    %1245 = vmatprep.subr.bf16.mxu0 0
    %1246 = vmatpush1.bf16.msra.mxu0 0
    %1247 = vmatprep.subr.bf16.mxu0 0
    %1248 = vmatpush1.bf16.msra.mxu0 0
    %1249 = vmatprep.subr.bf16.mxu0 0
    %1250 = vmatpush1.bf16.msra.mxu0 0
    %1251 = vmatprep.mubr.bf16.mxu0 0
    %1252 = vmatmul.mubr.bf16.gmra.mrb[0].mxu0 %v1213
    %v1253 = vpop.f32.mrb[0].mxu0
    %v1254 = vadd.f32 0.0, %v1253
    %v1255 = vpop.f32.mrb[0].mxu0
    %v1256 = vpop.f32.mrb[0].mxu0
    %v1257 = vpop.f32.mrb[0].mxu0
    %1258 = vdwg.mxu0
    %v1260 = vsel %vm1211, %v1192, 0
    %v1263 = vsel %vm1215, %v1210, 0
    %1265 = vmatprep.subr.bf16.mxu0 0
    %1266 = vmatpush1.bf16.msra.mxu0 %v1263
    %1267 = vmatprep.subr.bf16.mxu0 0
    %1268 = vmatpush1.bf16.msra.mxu0 0
    %1269 = vmatprep.subr.bf16.mxu0 0
    %1270 = vmatpush1.bf16.msra.mxu0 0
    %1271 = vmatprep.subr.bf16.mxu0 0
    %1272 = vmatpush1.bf16.msra.mxu0 0
    %1273 = vmatprep.subr.bf16.mxu0 0
    %1274 = vmatpush1.bf16.msra.mxu0 0
    %1275 = vmatprep.subr.bf16.mxu0 0
    %1276 = vmatpush1.bf16.msra.mxu0 0
    %1277 = vmatprep.subr.bf16.mxu0 0
    %1278 = vmatpush1.bf16.msra.mxu0 0
    %1279 = vmatprep.subr.bf16.mxu0 0
    %1280 = vmatpush1.bf16.msra.mxu0 0
    %1281 = vmatprep.subr.bf16.mxu0 0
    %1282 = vmatpush1.bf16.msra.mxu0 0
    %1283 = vmatprep.subr.bf16.mxu0 0
    %1284 = vmatpush1.bf16.msra.mxu0 0
    %1285 = vmatprep.subr.bf16.mxu0 0
    %1286 = vmatpush1.bf16.msra.mxu0 0
    %1287 = vmatprep.subr.bf16.mxu0 0
    %1288 = vmatpush1.bf16.msra.mxu0 0
    %1289 = vmatprep.subr.bf16.mxu0 0
    %1290 = vmatpush1.bf16.msra.mxu0 0
    %1291 = vmatprep.subr.bf16.mxu0 0
    %1292 = vmatpush1.bf16.msra.mxu0 0
    %1293 = vmatprep.subr.bf16.mxu0 0
    %1294 = vmatpush1.bf16.msra.mxu0 0
    %1295 = vmatprep.subr.bf16.mxu0 0
    %1296 = vmatpush1.bf16.msra.mxu0 0
    %1297 = vmatprep.mubr.bf16.mxu0 0
    %1298 = vmatmul.mubr.bf16.gmra.mrb[0].mxu0 %v1260
    %v1299 = vpop.f32.mrb[0].mxu0
    %v1300 = vadd.f32 0.0, %v1299
    %v1301 = vpop.f32.mrb[0].mxu0
    %v1302 = vpop.f32.mrb[0].mxu0
    %v1303 = vpop.f32.mrb[0].mxu0
    %1304 = vdwg.mxu0
    %1306 = vset.pattern.permute.xlu0 0
    %1307 = vperm.xlu0 %1306, %v1069
    %v1308 = vpop.permute.xlu0 %1307
    %1311 = vset.pattern.permute.xlu0 0
    %1312 = vperm.xlu0 %1311, %v1071
    %v1313 = vpop.permute.xlu0 %1312
    %v1315 = vmul.f32 %v1254, %v1308
    %v1316 = vmul.f32 %v1300, %v1313
    %v1317 = vld [vmem:[#allocation5] sm:$0x1]
    %v1319 = vlaneseq
    %v1320 = vshrl.u32 %v1319, 7
    %v1321 = vsub.s32 0, %v1320
    %v1322 = vrot.slane %v1317, %v1321
    %1323 = vset.pattern.permute.xlu0 0
    %1324 = vperm.xlu0 %1323, %v1322
    %v1325 = vpop.permute.xlu0 %1324
    %v1327 = vmul.f32 %v1325, %v793
    %v1328 = vmul.f32 %v1325, %v794
    %v1329 = vadd.f32 %v1315, %v1327
    %v1330 = vadd.f32 %v1316, %v1328
    %1331 = vst.msk [vmem:[#allocation2] sm:$0xff] %vm1091, %v1329
    %1332 = vst.msk [vmem:[#allocation2 + $0x8] sm:$0xff] %vm1091, %v1330
    %v1333 = vld [vmem:[#allocation2] sm:$0xff]
    %v1334 = vld [vmem:[#allocation2 + $0x8] sm:$0xff]
    %v1335 = vmul.f32 %v369, 0.5
    %v1336 = vmul.f32 %v372, 0.5
    %v1337 = vtanh.pop %v1335
    %v1338 = vtanh.pop %v1336
    %v1339 = vmul.f32 %v1337, 0.5
    %v1340 = vmul.f32 %v1338, 0.5
    %v1341 = vadd.f32 %v1339, 0.5
    %v1342 = vadd.f32 %v1340, 0.5
    %v1343 = vmul.f32 %v369, %v1341
    %v1344 = vmul.f32 %v372, %v1342
    %v1345 = vmul.f32 %v1333, %v1343
    %v1346 = vmul.f32 %v1334, %v1344
    %v1347 = vmul.f32 %v1345, %v1345
    %v1348 = vmul.f32 %v1346, %v1346
    %v1349 = vsel %vm1091, %v1347, 0.0
    %1350 = vadd.xlane.f32.xlu0 %v1349
    %v1351 = vpop.xlane.xlu0 %1350
    %v1352 = vsel %vm1091, %v1348, 0.0
    %1353 = vadd.xlane.f32.xlu0 %v1352
    %v1354 = vpop.xlane.xlu0 %1353
    %v1355 = vrcp.pop 64.0
    %v1356 = vmul.f32 %v1351, %v1355
    %v1357 = vmul.f32 %v1354, %v1355
    %v1358 = vadd.f32 %v1356, 1e-05
    %v1359 = vadd.f32 %v1357, 1e-05
    %v1360 = vrsqrt.pop %v1358
    %v1361 = vrsqrt.pop %v1359
    %v1362 = vmul.f32 %v1345, %v1360
    %v1363 = vmul.f32 %v1346, %v1361
    %v1364 = vld [vmem:[#allocation26] sm:$0x1]
    %v1366 = vlaneseq
    %v1367 = vshrl.u32 %v1366, 7
    %v1368 = vsub.s32 0, %v1367
    %v1369 = vrot.slane %v1364, %v1368
    %v1371 = vmul.f32 %v1362, %v1369
    %v1372 = vmul.f32 %v1363, %v1369
    %v1373 = vpack.c.bf16 %v1372, %v1371
    %v1374 = vld [vmem:[#allocation27] sm:$0xf]
    %v1375 = vld [vmem:[#allocation27 + $0x4] sm:$0xf]
    %v1376 = vld [vmem:[#allocation27 + $0x8] sm:$0xf]
    %v1377 = vld [vmem:[#allocation27 + $0xc] sm:$0xf]
    %v1378 = vld [vmem:[#allocation27 + $0x10] sm:$0xf]
    %v1379 = vld [vmem:[#allocation27 + $0x14] sm:$0xf]
    %v1380 = vld [vmem:[#allocation27 + $0x18] sm:$0xf]
    %v1381 = vld [vmem:[#allocation27 + $0x1c] sm:$0xf]
    %v1390 = vunpack.c.l.b16 %v1374
    %v1391 = vunpack.c.l.b16 %v1375
    %v1392 = vunpack.c.l.b16 %v1376
    %v1393 = vunpack.c.l.b16 %v1377
    %v1394 = vunpack.c.l.b16 %v1378
    %v1395 = vunpack.c.l.b16 %v1379
    %v1396 = vunpack.c.l.b16 %v1380
    %v1397 = vunpack.c.l.b16 %v1381
    %v1398 = vpack.c.b16 %v1391, %v1390
    %v1399 = vpack.c.b16 %v1393, %v1392
    %v1400 = vpack.c.b16 %v1395, %v1394
    %v1401 = vpack.c.b16 %v1397, %v1396
    %v1407 = vsel %vm1091, %v1373, 0
    %1409 = vmatprep.subr.bf16.mxu0 0
    %1410 = vmatpush1.bf16.msra.mxu0 %v1398
    %1411 = vmatprep.subr.bf16.mxu0 0
    %1412 = vmatpush1.bf16.msra.mxu0 %v1399
    %1413 = vmatprep.subr.bf16.mxu0 0
    %1414 = vmatpush1.bf16.msra.mxu0 %v1400
    %1415 = vmatprep.subr.bf16.mxu0 0
    %1416 = vmatpush1.bf16.msra.mxu0 %v1401
    %1417 = vmatprep.subr.bf16.mxu0 0
    %1418 = vmatpush1.bf16.msra.mxu0 0
    %1419 = vmatprep.subr.bf16.mxu0 0
    %1420 = vmatpush1.bf16.msra.mxu0 0
    %1421 = vmatprep.subr.bf16.mxu0 0
    %1422 = vmatpush1.bf16.msra.mxu0 0
    %1423 = vmatprep.subr.bf16.mxu0 0
    %1424 = vmatpush1.bf16.msra.mxu0 0
    %1425 = vmatprep.subr.bf16.mxu0 0
    %1426 = vmatpush1.bf16.msra.mxu0 0
    %1427 = vmatprep.subr.bf16.mxu0 0
    %1428 = vmatpush1.bf16.msra.mxu0 0
    %1429 = vmatprep.subr.bf16.mxu0 0
    %1430 = vmatpush1.bf16.msra.mxu0 0
    %1431 = vmatprep.subr.bf16.mxu0 0
    %1432 = vmatpush1.bf16.msra.mxu0 0
    %1433 = vmatprep.subr.bf16.mxu0 0
    %1434 = vmatpush1.bf16.msra.mxu0 0
    %1435 = vmatprep.subr.bf16.mxu0 0
    %1436 = vmatpush1.bf16.msra.mxu0 0
    %1437 = vmatprep.subr.bf16.mxu0 0
    %1438 = vmatpush1.bf16.msra.mxu0 0
    %1439 = vmatprep.subr.bf16.mxu0 0
    %1440 = vmatpush1.bf16.msra.mxu0 0
    %1441 = vmatprep.mubr.bf16.mxu0 0
    %1442 = vmatmul.mubr.bf16.gmra.mrb[0].mxu0 %v1407
    %v1443 = vpop.f32.mrb[0].mxu0
    %v1444 = vadd.f32 0.0, %v1443
    %v1445 = vpop.f32.mrb[0].mxu0
    %v1446 = vpop.f32.mrb[0].mxu0
    %v1447 = vadd.f32 0.0, %v1446
    %v1448 = vpop.f32.mrb[0].mxu0
    %1449 = vdwg.mxu0
    %1450 = vst [vmem:[#allocation29] sm:$0xff] %v1444
    %1451 = vst [vmem:[#allocation29 + $0x8] sm:$0xff] %v1447
    // Predicated region
    $region126: #{tpu_custom_call.1} parent=1 // pred_check
      _
    $region127: #{tpu_custom_call.1} parent=1 // pred_check_branch
      %1453 = sbr.rel (0) target = $region129
    $region128: #{tpu_custom_call.1} parent=1 // pred_region
      %s1455 = ssub.s32 256, 256
      %1456 = vsyncadd [#allocation8], %s1455
      %s1457 = sshll.u32 [#allocation29], 4
      %s1458 = int_to_ptr.vmem [resolvable:$true] %s1457
      %1463 = dma.vmem_to_hbm [thread:$0]  %s1458, 256, %s17, [#allocation8], 128, 128, 8
    $region129: #{tpu_custom_call.1} parent=1 // pred_fallthru
      _
    // Predicated region
    $region130: #{tpu_custom_call.1} parent=1 // pred_check
      _
    $region131: #{tpu_custom_call.1} parent=1 // pred_check_branch
      %1465 = sbr.rel (0) target = $region133
    $region132: #{tpu_custom_call.1} parent=1 // pred_region
      %1466 = dma.done [#allocation8], 256
    $region133: #{tpu_custom_call.1} parent=1 // pred_fallthru
      _
    %1467 = vsyncpa [#allocation7], 1
    %1468 = vsyncpa [#allocation10], 1
    %1469 = vsyncpa [#allocation13], 1
    %1470 = vsyncpa [#allocation16], 1
    %1471 = vsyncpa [#allocation19], 1
    %1472 = vsyncpa [#allocation22], 1
    %1473 = vsyncpa [#allocation25], 1
    %1474 = vsyncpa [#allocation28], 1
    %1475 = vsyncpa [#allocation8], 1

</llo_original>
